<compile_context>
chip_gen: v7x
topology: tpu7x:2x2x1
jax: 0.10.0
libtpu: 0.0.40
codegen_flags: <defaults>
</compile_context>

<pallas_src>
import math

import jax
import jax.numpy as jnp
from jax.experimental import pallas as pl
from jax.experimental.pallas import tpu as pltpu


# ----------------------------------------------------------------------------
# Glue: sinusoidal position table (computed once in plain JAX)
# ----------------------------------------------------------------------------
def sinusoidal_pos(L, D):
    pos = jnp.arange(L, dtype=jnp.float32)[:, None]                      # (L, 1)
    i = jnp.arange(D // 2, dtype=jnp.float32)[None, :]                   # (1, D/2)
    angle = pos / jnp.power(10000.0, (2.0 * i) / D)                      # (L, D/2)
    pe = jnp.zeros((L, D), dtype=jnp.float32)
    pe = pe.at[:, 0::2].set(jnp.sin(angle))
    pe = pe.at[:, 1::2].set(jnp.cos(angle))
    return pe


# ----------------------------------------------------------------------------
# Pallas kernel: one batch element per grid step
# ----------------------------------------------------------------------------
def query_generator_pallas(gen_input, enc_input, enc_out, params, num_heads):
    B, L, D = gen_input.shape
    S = enc_input.shape[1]
    H = num_heads
    dh = D // H
    scale = 1.0 / math.sqrt(dh)
    eps = 1e-5

    p1, p2, ln = params["attn1"], params["attn2"], params["ln"]

    # ------------------------------------------------------------------
    # One-time (trace-time) parameter transforms in plain JAX
    # ------------------------------------------------------------------
    pos = sinusoidal_pos(L, D)
    # attn1 query projection is input-invariant: precompute (f32) and fold in the
    # 1/sqrt(dh) softmax scale.
    q1 = (pos @ p1["wq"] + p1["bq"]) * scale                             # (L, D)

    # Lane-dense, bf16 weight packing (matmul operands); biases/LN params stay f32.
    wkv1 = jnp.concatenate([p1["wk"], p1["wv"]], axis=1).astype(jnp.bfloat16)   # (D, 2D)
    wstk = jnp.stack([p2["wq"] * scale,                                  # scale folded in
                      p2["wk"], p2["wv"],
                      p1["wo"], p2["wo"]]).astype(jnp.bfloat16)          # (5, D, D)
    bias = jnp.concatenate([p1["bk"], p1["bv"],
                            p2["bq"] * scale, p2["bk"], p2["bv"],
                            p1["bo"], p2["bo"],
                            ln["gamma"], ln["beta"]], axis=0)            # (9, D)

    # ------------------------------------------------------------------
    # Kernel body (one batch element)
    # ------------------------------------------------------------------
    def kernel(q1_ref, gen_ref, enc_in_ref, enc_out_ref,
               wkv1_ref, wstk_ref, bias_ref, out_ref):
        q1_v = q1_ref[...]                       # (L, D)  f32, pre-scaled queries
        gen = gen_ref[0]                         # (L, D)  f32
        enc_in = enc_in_ref[0]                   # (S, D)
        enc_ot = enc_out_ref[0]                  # (S, D)
        wkv1_v = wkv1_ref[...]                   # (D, 2D) bf16
        wq2 = wstk_ref[0]                        # (D, D)  bf16  (scale folded in)
        wk2 = wstk_ref[1]
        wv2 = wstk_ref[2]
        wo1 = wstk_ref[3]
        wo2 = wstk_ref[4]
        b = bias_ref[...]                        # (9, D)  f32
        bk1, bv1 = b[0:1], b[1:2]
        bq2, bk2, bv2 = b[2:3], b[3:4], b[4:5]
        bo1, bo2 = b[5:6], b[6:7]
        gamma, beta = b[7:8], b[8:9]

        def mm(x, w):
            # full-width (N, D) @ (D, *) on the MXU: bf16 operands, f32 accumulate
            return jnp.dot(x.astype(jnp.bfloat16), w,
                           preferred_element_type=jnp.float32)

        def attend(q, k, v, wo, bo):
            # q pre-scaled (Lq, D); k, v: (Lk, D); wo: (D, D) bf16; bo: (1, D)
            qb = q.astype(jnp.bfloat16)
            kb = k.astype(jnp.bfloat16)
            vb = v.astype(jnp.bfloat16)
            outs = []
            for h in range(H):                   # heads split only for tiny score/PV
                sl = slice(h * dh, (h + 1) * dh)
                s = jnp.einsum("qe,ke->qk", qb[:, sl], kb[:, sl],
                               preferred_element_type=jnp.float32)       # (Lq, Lk)
                s = s - jnp.max(s, axis=-1, keepdims=True)
                p = jnp.exp(s)
                p = p * pl.reciprocal(jnp.sum(p, axis=-1, keepdims=True),
                                      approx=True)
                outs.append(jnp.einsum("qk,ke->qe", p.astype(jnp.bfloat16),
                                       vb[:, sl],
                                       preferred_element_type=jnp.float32))
            o = jnp.concatenate(outs, axis=-1)   # (Lq, D)  concat heads along lanes
            return mm(o, wo) + bo                # fused full-width output projection

        # (1) self-attention with positional-encoding queries; K|V fused matmul
        kv1 = mm(gen, wkv1_v)                    # (L, 2D)
        k1 = kv1[:, :D] + bk1
        v1 = kv1[:, D:] + bv1
        y = attend(q1_v, k1, v1, wo1, bo1)       # (L, D)

        # (2) AddNorm: LayerNorm(gen + dropout(y)); dropout = identity (eval)
        x = gen + y
        mu = jnp.mean(x, axis=-1, keepdims=True)
        var = jnp.mean((x - mu) ** 2, axis=-1, keepdims=True)
        xn = (x - mu) * jax.lax.rsqrt(var + eps) * gamma + beta

        # (3) cross-attention: query = xn, key = enc_out, value = enc_input
        q2 = mm(xn, wq2) + bq2                   # scale already folded into wq2/bq2
        k2 = mm(enc_ot, wk2) + bk2
        v2 = mm(enc_in, wv2) + bv2
        out_ref[0] = attend(q2, k2, v2, wo2, bo2).astype(out_ref.dtype)

    # ------------------------------------------------------------------
    # grid=(B,), parallel over batch (megacore-shardable on v7x)
    # ------------------------------------------------------------------
    def act_spec(seq):
        return pl.BlockSpec((1, seq, D), lambda bb: (bb, 0, 0))

    def const_spec(shape):
        return pl.BlockSpec(shape, lambda bb: (0,) * len(shape))

    return pl.pallas_call(
        kernel,
        out_shape=jax.ShapeDtypeStruct((B, L, D), jnp.float32),
        grid_spec=pltpu.PrefetchScalarGridSpec(
            num_scalar_prefetch=0,
            grid=(B,),
            in_specs=[
                const_spec((L, D)),         # precomputed, pre-scaled attn1 queries
                act_spec(L),                # gen_input
                act_spec(S),                # enc_input
                act_spec(S),                # enc_out
                const_spec((D, 2 * D)),     # fused Wk1|Wv1 (bf16)
                const_spec((5, D, D)),      # Wq2*scale | Wk2 | Wv2 | Wo1 | Wo2 (bf16)
                const_spec((9, D)),         # bk1|bv1|bq2|bk2|bv2|bo1|bo2|gamma|beta
            ],
            out_specs=pl.BlockSpec((1, L, D), lambda bb: (bb, 0, 0)),
        ),
        compiler_params=pltpu.CompilerParams(dimension_semantics=("parallel",)),
    )(q1, gen_input, enc_input, enc_out, wkv1, wstk, bias)


# ----------------------------------------------------------------------------
# Pure-JAX reference (mirrors the PyTorch forward semantics, f32 everywhere)
# ----------------------------------------------------------------------------
def query_generator_ref(gen, enc_in, enc_out, params, num_heads):
    B, L, D = gen.shape
    dh = D // num_heads
    pos = jnp.broadcast_to(sinusoidal_pos(L, D), gen.shape)

    def mha(q, k, v, p):
        Q = q @ p["wq"] + p["bq"]
        K = k @ p["wk"] + p["bk"]
        V = v @ p["wv"] + p["bv"]
        split = lambda x: x.reshape(B, -1, num_heads, dh).transpose(0, 2, 1, 3)
        Qh, Kh, Vh = split(Q), split(K), split(V)
        s = jnp.einsum("bhqd,bhkd->bhqk", Qh, Kh) / math.sqrt(dh)
        a = jax.nn.softmax(s, axis=-1)
        o = jnp.einsum("bhqk,bhkd->bhqd", a, Vh)
        o = o.transpose(0, 2, 1, 3).reshape(B, -1, D)
        return o @ p["wo"] + p["bo"]

    y = mha(pos, gen, gen, params["attn1"])
    x = gen + y
    mu = x.mean(-1, keepdims=True)
    var = ((x - mu) ** 2).mean(-1, keepdims=True)
    xn = (x - mu) / jnp.sqrt(var + 1e-5) * params["ln"]["gamma"] + params["ln"]["beta"]
    return mha(xn, enc_out, enc_in, params["attn2"])


# ----------------------------------------------------------------------------
# Deterministic parameter init + smoke test
# ----------------------------------------------------------------------------
def init_params(key, d_model):
    def linear(k):
        kw, kb = jax.random.split(k)
        return (0.02 * jax.random.normal(kw, (d_model, d_model), jnp.float32),
                0.02 * jax.random.normal(kb, (1, d_model), jnp.float32))

    ks = jax.random.split(key, 10)
    p = {"attn1": {}, "attn2": {}, "ln": {}}
    for i, name in enumerate(["wq", "wk", "wv", "wo"]):
        w, b = linear(ks[i])
        p["attn1"][name] = w
        p["attn1"]["b" + name[1]] = b
    for i, name in enumerate(["wq", "wk", "wv", "wo"]):
        w, b = linear(ks[4 + i])
        p["attn2"][name] = w
        p["attn2"]["b" + name[1]] = b
    p["ln"]["gamma"] = 1.0 + 0.1 * jax.random.normal(ks[8], (1, d_model), jnp.float32)
    p["ln"]["beta"] = 0.1 * jax.random.normal(ks[9], (1, d_model), jnp.float32)
    return p


if __name__ == "__main__":
    B, L, S, D, H = 2, 8, 16, 32, 4   # batch, gen-seq, enc-seq, d_model, num_heads

    key = jax.random.PRNGKey(0)
    k_gen, k_ein, k_eout, k_par = jax.random.split(key, 4)
    gen_input = jax.random.normal(k_gen, (B, L, D), jnp.float32)
    enc_input = jax.random.normal(k_ein, (B, S, D), jnp.float32)
    enc_out = jax.random.normal(k_eout, (B, S, D), jnp.float32)
    params = init_params(k_par, D)

    out = query_generator_pallas(gen_input, enc_input, enc_out, params, H)
    out = jax.block_until_ready(out)

    ref = query_generator_ref(gen_input, enc_input, enc_out, params, H)
    assert out.shape == (B, L, D)
    # bf16 MXU operands + approx reciprocal vs. the f32 reference -> loosened tolerance.
    assert jnp.allclose(out, ref, atol=5e-3, rtol=5e-2), \
        f"max abs err = {float(jnp.max(jnp.abs(out - ref)))}"

    print("KERNEL_OK")
</pallas_src>

<mosaic_0001>
module attributes {stable_mosaic.version = 11 : i64} {
  func.func @kernel(%arg0: i32, %arg1: memref<8x32xf32, #tpu.memory_space<vmem>>, %arg2: memref<1x8x32xf32, #tpu.memory_space<vmem>>, %arg3: memref<1x16x32xf32, #tpu.memory_space<vmem>>, %arg4: memref<1x16x32xf32, #tpu.memory_space<vmem>>, %arg5: memref<32x64xbf16, #tpu.memory_space<vmem>>, %arg6: memref<5x32x32xbf16, #tpu.memory_space<vmem>>, %arg7: memref<9x32xf32, #tpu.memory_space<vmem>>, %arg8: memref<1x8x32xf32, #tpu.memory_space<vmem>>) attributes {dimension_semantics = [#tpu.dimension_semantics<parallel>], iteration_bounds = array<i64: 2>, scalar_prefetch = 0 : i64, scratch_operands = 0 : i64, tpu.core_type = #tpu.core_type<tc>, window_params = [{pipeline_mode = #tpu.pipeline_mode<synchronous>, transform_indices = @transform_0, window_bounds = array<i64: 8, 32>}, {transform_indices = @transform_1, window_bounds = array<i64: 1, 8, 32>}, {transform_indices = @transform_2, window_bounds = array<i64: 1, 16, 32>}, {transform_indices = @transform_3, window_bounds = array<i64: 1, 16, 32>}, {pipeline_mode = #tpu.pipeline_mode<synchronous>, transform_indices = @transform_4, window_bounds = array<i64: 32, 64>}, {pipeline_mode = #tpu.pipeline_mode<synchronous>, transform_indices = @transform_5, window_bounds = array<i64: 5, 32, 32>}, {pipeline_mode = #tpu.pipeline_mode<synchronous>, transform_indices = @transform_6, window_bounds = array<i64: 9, 32>}, {transform_indices = @transform_7, window_bounds = array<i64: 1, 8, 32>}]} {
    %c0 = arith.constant 0 : index
    %c0_0 = arith.constant 0 : index
    %0 = vector.load %arg1[%c0, %c0_0] : memref<8x32xf32, #tpu.memory_space<vmem>>, vector<8x32xf32>
    %c0_1 = arith.constant 0 : index
    %c0_2 = arith.constant 0 : index
    %c0_3 = arith.constant 0 : index
    %1 = vector.load %arg2[%c0_1, %c0_2, %c0_3] : memref<1x8x32xf32, #tpu.memory_space<vmem>>, vector<1x8x32xf32>
    %2 = vector.shape_cast %1 : vector<1x8x32xf32> to vector<8x32xf32>
    %c0_4 = arith.constant 0 : index
    %c0_5 = arith.constant 0 : index
    %c0_6 = arith.constant 0 : index
    %3 = vector.load %arg3[%c0_4, %c0_5, %c0_6] : memref<1x16x32xf32, #tpu.memory_space<vmem>>, vector<1x16x32xf32>
    %4 = vector.shape_cast %3 : vector<1x16x32xf32> to vector<16x32xf32>
    %c0_7 = arith.constant 0 : index
    %c0_8 = arith.constant 0 : index
    %c0_9 = arith.constant 0 : index
    %5 = vector.load %arg4[%c0_7, %c0_8, %c0_9] : memref<1x16x32xf32, #tpu.memory_space<vmem>>, vector<1x16x32xf32>
    %6 = vector.shape_cast %5 : vector<1x16x32xf32> to vector<16x32xf32>
    %c0_10 = arith.constant 0 : index
    %c0_11 = arith.constant 0 : index
    %7 = vector.load %arg5[%c0_10, %c0_11] : memref<32x64xbf16, #tpu.memory_space<vmem>>, vector<32x64xbf16>
    %c0_12 = arith.constant 0 : index
    %c0_13 = arith.constant 0 : index
    %c0_14 = arith.constant 0 : index
    %8 = vector.load %arg6[%c0_12, %c0_13, %c0_14] : memref<5x32x32xbf16, #tpu.memory_space<vmem>>, vector<1x32x32xbf16>
    %9 = vector.shape_cast %8 : vector<1x32x32xbf16> to vector<32x32xbf16>
    %c1 = arith.constant 1 : index
    %c0_15 = arith.constant 0 : index
    %c0_16 = arith.constant 0 : index
    %10 = vector.load %arg6[%c1, %c0_15, %c0_16] : memref<5x32x32xbf16, #tpu.memory_space<vmem>>, vector<1x32x32xbf16>
    %11 = vector.shape_cast %10 : vector<1x32x32xbf16> to vector<32x32xbf16>
    %c2 = arith.constant 2 : index
    %c0_17 = arith.constant 0 : index
    %c0_18 = arith.constant 0 : index
    %12 = vector.load %arg6[%c2, %c0_17, %c0_18] : memref<5x32x32xbf16, #tpu.memory_space<vmem>>, vector<1x32x32xbf16>
    %13 = vector.shape_cast %12 : vector<1x32x32xbf16> to vector<32x32xbf16>
    %c3 = arith.constant 3 : index
    %c0_19 = arith.constant 0 : index
    %c0_20 = arith.constant 0 : index
    %14 = vector.load %arg6[%c3, %c0_19, %c0_20] : memref<5x32x32xbf16, #tpu.memory_space<vmem>>, vector<1x32x32xbf16>
    %15 = vector.shape_cast %14 : vector<1x32x32xbf16> to vector<32x32xbf16>
    %c4 = arith.constant 4 : index
    %c0_21 = arith.constant 0 : index
    %c0_22 = arith.constant 0 : index
    %16 = vector.load %arg6[%c4, %c0_21, %c0_22] : memref<5x32x32xbf16, #tpu.memory_space<vmem>>, vector<1x32x32xbf16>
    %17 = vector.shape_cast %16 : vector<1x32x32xbf16> to vector<32x32xbf16>
    %c0_23 = arith.constant 0 : index
    %c0_24 = arith.constant 0 : index
    %18 = vector.load %arg7[%c0_23, %c0_24] : memref<9x32xf32, #tpu.memory_space<vmem>>, vector<9x32xf32>
    %19 = vector.extract_strided_slice %18 {offsets = [0, 0], sizes = [1, 32], strides = [1, 1]} : vector<9x32xf32> to vector<1x32xf32>
    %20 = vector.extract_strided_slice %18 {offsets = [1, 0], sizes = [1, 32], strides = [1, 1]} : vector<9x32xf32> to vector<1x32xf32>
    %21 = vector.extract_strided_slice %18 {offsets = [2, 0], sizes = [1, 32], strides = [1, 1]} : vector<9x32xf32> to vector<1x32xf32>
    %22 = vector.extract_strided_slice %18 {offsets = [3, 0], sizes = [1, 32], strides = [1, 1]} : vector<9x32xf32> to vector<1x32xf32>
    %23 = vector.extract_strided_slice %18 {offsets = [4, 0], sizes = [1, 32], strides = [1, 1]} : vector<9x32xf32> to vector<1x32xf32>
    %24 = vector.extract_strided_slice %18 {offsets = [5, 0], sizes = [1, 32], strides = [1, 1]} : vector<9x32xf32> to vector<1x32xf32>
    %25 = vector.extract_strided_slice %18 {offsets = [6, 0], sizes = [1, 32], strides = [1, 1]} : vector<9x32xf32> to vector<1x32xf32>
    %26 = vector.extract_strided_slice %18 {offsets = [7, 0], sizes = [1, 32], strides = [1, 1]} : vector<9x32xf32> to vector<1x32xf32>
    %27 = vector.extract_strided_slice %18 {offsets = [8, 0], sizes = [1, 32], strides = [1, 1]} : vector<9x32xf32> to vector<1x32xf32>
    %28 = arith.truncf %2 : vector<8x32xf32> to vector<8x32xbf16>
    %cst = arith.constant dense<0.000000e+00> : vector<8x64xf32>
    %29 = tpu.matmul %28, %7, %cst {dimension_numbers = #tpu.dot_dimension_numbers<[1], [0], [0], [1], [0, 0, 1, 1], [], []>} : vector<8x32xbf16>, vector<32x64xbf16>, vector<8x64xf32> -> vector<8x64xf32>
    %30 = vector.extract_strided_slice %29 {offsets = [0, 0], sizes = [8, 32], strides = [1, 1]} : vector<8x64xf32> to vector<8x32xf32>
    %31 = vector.broadcast %19 : vector<1x32xf32> to vector<8x32xf32>
    %32 = arith.addf %30, %31 : vector<8x32xf32>
    %33 = vector.extract_strided_slice %29 {offsets = [0, 32], sizes = [8, 32], strides = [1, 1]} : vector<8x64xf32> to vector<8x32xf32>
    %34 = vector.broadcast %20 : vector<1x32xf32> to vector<8x32xf32>
    %35 = arith.addf %33, %34 : vector<8x32xf32>
    %36 = arith.truncf %0 : vector<8x32xf32> to vector<8x32xbf16>
    %37 = arith.truncf %32 : vector<8x32xf32> to vector<8x32xbf16>
    %38 = arith.truncf %35 : vector<8x32xf32> to vector<8x32xbf16>
    %39 = vector.extract_strided_slice %36 {offsets = [0, 0], sizes = [8, 8], strides = [1, 1]} : vector<8x32xbf16> to vector<8x8xbf16>
    %40 = vector.extract_strided_slice %37 {offsets = [0, 0], sizes = [8, 8], strides = [1, 1]} : vector<8x32xbf16> to vector<8x8xbf16>
    "tpu.trace_start"() <{level = 10 : i32, message = "qe,ke->qk"}> : () -> ()
    %cst_25 = arith.constant dense<0.000000e+00> : vector<8x8xf32>
    %41 = tpu.matmul %39, %40, %cst_25 {dimension_numbers = #tpu.dot_dimension_numbers<[1], [1], [0], [0], [0, 0, 1, 0], [], []>} : vector<8x8xbf16>, vector<8x8xbf16>, vector<8x8xf32> -> vector<8x8xf32>
    "tpu.trace_stop"() : () -> ()
    %cst_26 = arith.constant dense<0xFF800000> : vector<8xf32>
    %42 = vector.multi_reduction <maximumf>, %41, %cst_26 [1] : vector<8x8xf32> to vector<8xf32>
    %43 = vector.shape_cast %42 : vector<8xf32> to vector<8x1xf32>
    %44 = vector.broadcast %43 : vector<8x1xf32> to vector<8x8xf32>
    %45 = arith.subf %41, %44 : vector<8x8xf32>
    %46 = math.exp %45 : vector<8x8xf32>
    %cst_27 = arith.constant dense<0.000000e+00> : vector<8xf32>
    %47 = vector.multi_reduction <add>, %46, %cst_27 [1] : vector<8x8xf32> to vector<8xf32>
    %48 = vector.shape_cast %47 : vector<8xf32> to vector<8x1xf32>
    %49 = tpu.reciprocal %48 {approx = true} : vector<8x1xf32> -> vector<8x1xf32>
    %50 = vector.broadcast %49 : vector<8x1xf32> to vector<8x8xf32>
    %51 = arith.mulf %46, %50 : vector<8x8xf32>
    %52 = arith.truncf %51 : vector<8x8xf32> to vector<8x8xbf16>
    %53 = vector.extract_strided_slice %38 {offsets = [0, 0], sizes = [8, 8], strides = [1, 1]} : vector<8x32xbf16> to vector<8x8xbf16>
    "tpu.trace_start"() <{level = 10 : i32, message = "qk,ke->qe"}> : () -> ()
    %cst_28 = arith.constant dense<0.000000e+00> : vector<8x8xf32>
    %54 = tpu.matmul %52, %53, %cst_28 {dimension_numbers = #tpu.dot_dimension_numbers<[1], [0], [0], [1], [0, 0, 1, 1], [], []>} : vector<8x8xbf16>, vector<8x8xbf16>, vector<8x8xf32> -> vector<8x8xf32>
    "tpu.trace_stop"() : () -> ()
    %55 = vector.extract_strided_slice %36 {offsets = [0, 8], sizes = [8, 8], strides = [1, 1]} : vector<8x32xbf16> to vector<8x8xbf16>
    %56 = vector.extract_strided_slice %37 {offsets = [0, 8], sizes = [8, 8], strides = [1, 1]} : vector<8x32xbf16> to vector<8x8xbf16>
    "tpu.trace_start"() <{level = 10 : i32, message = "qe,ke->qk"}> : () -> ()
    %cst_29 = arith.constant dense<0.000000e+00> : vector<8x8xf32>
    %57 = tpu.matmul %55, %56, %cst_29 {dimension_numbers = #tpu.dot_dimension_numbers<[1], [1], [0], [0], [0, 0, 1, 0], [], []>} : vector<8x8xbf16>, vector<8x8xbf16>, vector<8x8xf32> -> vector<8x8xf32>
    "tpu.trace_stop"() : () -> ()
    %cst_30 = arith.constant dense<0xFF800000> : vector<8xf32>
    %58 = vector.multi_reduction <maximumf>, %57, %cst_30 [1] : vector<8x8xf32> to vector<8xf32>
    %59 = vector.shape_cast %58 : vector<8xf32> to vector<8x1xf32>
    %60 = vector.broadcast %59 : vector<8x1xf32> to vector<8x8xf32>
    %61 = arith.subf %57, %60 : vector<8x8xf32>
    %62 = math.exp %61 : vector<8x8xf32>
    %cst_31 = arith.constant dense<0.000000e+00> : vector<8xf32>
    %63 = vector.multi_reduction <add>, %62, %cst_31 [1] : vector<8x8xf32> to vector<8xf32>
    %64 = vector.shape_cast %63 : vector<8xf32> to vector<8x1xf32>
    %65 = tpu.reciprocal %64 {approx = true} : vector<8x1xf32> -> vector<8x1xf32>
    %66 = vector.broadcast %65 : vector<8x1xf32> to vector<8x8xf32>
    %67 = arith.mulf %62, %66 : vector<8x8xf32>
    %68 = arith.truncf %67 : vector<8x8xf32> to vector<8x8xbf16>
    %69 = vector.extract_strided_slice %38 {offsets = [0, 8], sizes = [8, 8], strides = [1, 1]} : vector<8x32xbf16> to vector<8x8xbf16>
    "tpu.trace_start"() <{level = 10 : i32, message = "qk,ke->qe"}> : () -> ()
    %cst_32 = arith.constant dense<0.000000e+00> : vector<8x8xf32>
    %70 = tpu.matmul %68, %69, %cst_32 {dimension_numbers = #tpu.dot_dimension_numbers<[1], [0], [0], [1], [0, 0, 1, 1], [], []>} : vector<8x8xbf16>, vector<8x8xbf16>, vector<8x8xf32> -> vector<8x8xf32>
    "tpu.trace_stop"() : () -> ()
    %71 = vector.extract_strided_slice %36 {offsets = [0, 16], sizes = [8, 8], strides = [1, 1]} : vector<8x32xbf16> to vector<8x8xbf16>
    %72 = vector.extract_strided_slice %37 {offsets = [0, 16], sizes = [8, 8], strides = [1, 1]} : vector<8x32xbf16> to vector<8x8xbf16>
    "tpu.trace_start"() <{level = 10 : i32, message = "qe,ke->qk"}> : () -> ()
    %cst_33 = arith.constant dense<0.000000e+00> : vector<8x8xf32>
    %73 = tpu.matmul %71, %72, %cst_33 {dimension_numbers = #tpu.dot_dimension_numbers<[1], [1], [0], [0], [0, 0, 1, 0], [], []>} : vector<8x8xbf16>, vector<8x8xbf16>, vector<8x8xf32> -> vector<8x8xf32>
    "tpu.trace_stop"() : () -> ()
    %cst_34 = arith.constant dense<0xFF800000> : vector<8xf32>
    %74 = vector.multi_reduction <maximumf>, %73, %cst_34 [1] : vector<8x8xf32> to vector<8xf32>
    %75 = vector.shape_cast %74 : vector<8xf32> to vector<8x1xf32>
    %76 = vector.broadcast %75 : vector<8x1xf32> to vector<8x8xf32>
    %77 = arith.subf %73, %76 : vector<8x8xf32>
    %78 = math.exp %77 : vector<8x8xf32>
    %cst_35 = arith.constant dense<0.000000e+00> : vector<8xf32>
    %79 = vector.multi_reduction <add>, %78, %cst_35 [1] : vector<8x8xf32> to vector<8xf32>
    %80 = vector.shape_cast %79 : vector<8xf32> to vector<8x1xf32>
    %81 = tpu.reciprocal %80 {approx = true} : vector<8x1xf32> -> vector<8x1xf32>
    %82 = vector.broadcast %81 : vector<8x1xf32> to vector<8x8xf32>
    %83 = arith.mulf %78, %82 : vector<8x8xf32>
    %84 = arith.truncf %83 : vector<8x8xf32> to vector<8x8xbf16>
    %85 = vector.extract_strided_slice %38 {offsets = [0, 16], sizes = [8, 8], strides = [1, 1]} : vector<8x32xbf16> to vector<8x8xbf16>
    "tpu.trace_start"() <{level = 10 : i32, message = "qk,ke->qe"}> : () -> ()
    %cst_36 = arith.constant dense<0.000000e+00> : vector<8x8xf32>
    %86 = tpu.matmul %84, %85, %cst_36 {dimension_numbers = #tpu.dot_dimension_numbers<[1], [0], [0], [1], [0, 0, 1, 1], [], []>} : vector<8x8xbf16>, vector<8x8xbf16>, vector<8x8xf32> -> vector<8x8xf32>
    "tpu.trace_stop"() : () -> ()
    %87 = vector.extract_strided_slice %36 {offsets = [0, 24], sizes = [8, 8], strides = [1, 1]} : vector<8x32xbf16> to vector<8x8xbf16>
    %88 = vector.extract_strided_slice %37 {offsets = [0, 24], sizes = [8, 8], strides = [1, 1]} : vector<8x32xbf16> to vector<8x8xbf16>
    "tpu.trace_start"() <{level = 10 : i32, message = "qe,ke->qk"}> : () -> ()
    %cst_37 = arith.constant dense<0.000000e+00> : vector<8x8xf32>
    %89 = tpu.matmul %87, %88, %cst_37 {dimension_numbers = #tpu.dot_dimension_numbers<[1], [1], [0], [0], [0, 0, 1, 0], [], []>} : vector<8x8xbf16>, vector<8x8xbf16>, vector<8x8xf32> -> vector<8x8xf32>
    "tpu.trace_stop"() : () -> ()
    %cst_38 = arith.constant dense<0xFF800000> : vector<8xf32>
    %90 = vector.multi_reduction <maximumf>, %89, %cst_38 [1] : vector<8x8xf32> to vector<8xf32>
    %91 = vector.shape_cast %90 : vector<8xf32> to vector<8x1xf32>
    %92 = vector.broadcast %91 : vector<8x1xf32> to vector<8x8xf32>
    %93 = arith.subf %89, %92 : vector<8x8xf32>
    %94 = math.exp %93 : vector<8x8xf32>
    %cst_39 = arith.constant dense<0.000000e+00> : vector<8xf32>
    %95 = vector.multi_reduction <add>, %94, %cst_39 [1] : vector<8x8xf32> to vector<8xf32>
    %96 = vector.shape_cast %95 : vector<8xf32> to vector<8x1xf32>
    %97 = tpu.reciprocal %96 {approx = true} : vector<8x1xf32> -> vector<8x1xf32>
    %98 = vector.broadcast %97 : vector<8x1xf32> to vector<8x8xf32>
    %99 = arith.mulf %94, %98 : vector<8x8xf32>
    %100 = arith.truncf %99 : vector<8x8xf32> to vector<8x8xbf16>
    %101 = vector.extract_strided_slice %38 {offsets = [0, 24], sizes = [8, 8], strides = [1, 1]} : vector<8x32xbf16> to vector<8x8xbf16>
    "tpu.trace_start"() <{level = 10 : i32, message = "qk,ke->qe"}> : () -> ()
    %cst_40 = arith.constant dense<0.000000e+00> : vector<8x8xf32>
    %102 = tpu.matmul %100, %101, %cst_40 {dimension_numbers = #tpu.dot_dimension_numbers<[1], [0], [0], [1], [0, 0, 1, 1], [], []>} : vector<8x8xbf16>, vector<8x8xbf16>, vector<8x8xf32> -> vector<8x8xf32>
    "tpu.trace_stop"() : () -> ()
    %103 = tpu.concatenate %54, %70, %86, %102 in 1 : vector<8x8xf32>, vector<8x8xf32>, vector<8x8xf32>, vector<8x8xf32> -> vector<8x32xf32>
    %104 = arith.truncf %103 : vector<8x32xf32> to vector<8x32xbf16>
    %cst_41 = arith.constant dense<0.000000e+00> : vector<8x32xf32>
    %105 = tpu.matmul %104, %15, %cst_41 {dimension_numbers = #tpu.dot_dimension_numbers<[1], [0], [0], [1], [0, 0, 1, 1], [], []>} : vector<8x32xbf16>, vector<32x32xbf16>, vector<8x32xf32> -> vector<8x32xf32>
    %106 = vector.broadcast %24 : vector<1x32xf32> to vector<8x32xf32>
    %107 = arith.addf %105, %106 : vector<8x32xf32>
    %108 = arith.addf %2, %107 : vector<8x32xf32>
    %cst_42 = arith.constant dense<0.000000e+00> : vector<8xf32>
    %109 = vector.multi_reduction <add>, %108, %cst_42 [1] : vector<8x32xf32> to vector<8xf32>
    %110 = vector.shape_cast %109 : vector<8xf32> to vector<8x1xf32>
    %cst_43 = arith.constant 3.200000e+01 : f32
    %111 = vector.broadcast %cst_43 : f32 to vector<8x1xf32>
    %112 = arith.divf %110, %111 : vector<8x1xf32>
    %113 = vector.broadcast %112 : vector<8x1xf32> to vector<8x32xf32>
    %114 = arith.subf %108, %113 : vector<8x32xf32>
    %115 = arith.mulf %114, %114 : vector<8x32xf32>
    %cst_44 = arith.constant dense<0.000000e+00> : vector<8xf32>
    %116 = vector.multi_reduction <add>, %115, %cst_44 [1] : vector<8x32xf32> to vector<8xf32>
    %117 = vector.shape_cast %116 : vector<8xf32> to vector<8x1xf32>
    %cst_45 = arith.constant 3.200000e+01 : f32
    %118 = vector.broadcast %cst_45 : f32 to vector<8x1xf32>
    %119 = arith.divf %117, %118 : vector<8x1xf32>
    %120 = vector.broadcast %112 : vector<8x1xf32> to vector<8x32xf32>
    %121 = arith.subf %108, %120 : vector<8x32xf32>
    %cst_46 = arith.constant 9.99999974E-6 : f32
    %122 = vector.broadcast %cst_46 : f32 to vector<8x1xf32>
    %123 = arith.addf %119, %122 : vector<8x1xf32>
    %124 = math.rsqrt %123 : vector<8x1xf32>
    %125 = vector.broadcast %124 : vector<8x1xf32> to vector<8x32xf32>
    %126 = arith.mulf %121, %125 : vector<8x32xf32>
    %127 = vector.broadcast %26 : vector<1x32xf32> to vector<8x32xf32>
    %128 = arith.mulf %126, %127 : vector<8x32xf32>
    %129 = vector.broadcast %27 : vector<1x32xf32> to vector<8x32xf32>
    %130 = arith.addf %128, %129 : vector<8x32xf32>
    %131 = arith.truncf %130 : vector<8x32xf32> to vector<8x32xbf16>
    %cst_47 = arith.constant dense<0.000000e+00> : vector<8x32xf32>
    %132 = tpu.matmul %131, %9, %cst_47 {dimension_numbers = #tpu.dot_dimension_numbers<[1], [0], [0], [1], [0, 0, 1, 1], [], []>} : vector<8x32xbf16>, vector<32x32xbf16>, vector<8x32xf32> -> vector<8x32xf32>
    %133 = vector.broadcast %21 : vector<1x32xf32> to vector<8x32xf32>
    %134 = arith.addf %132, %133 : vector<8x32xf32>
    %135 = arith.truncf %6 : vector<16x32xf32> to vector<16x32xbf16>
    %cst_48 = arith.constant dense<0.000000e+00> : vector<16x32xf32>
    %136 = tpu.matmul %135, %11, %cst_48 {dimension_numbers = #tpu.dot_dimension_numbers<[1], [0], [0], [1], [0, 0, 1, 1], [], []>} : vector<16x32xbf16>, vector<32x32xbf16>, vector<16x32xf32> -> vector<16x32xf32>
    %137 = vector.broadcast %22 : vector<1x32xf32> to vector<16x32xf32>
    %138 = arith.addf %136, %137 : vector<16x32xf32>
    %139 = arith.truncf %4 : vector<16x32xf32> to vector<16x32xbf16>
    %cst_49 = arith.constant dense<0.000000e+00> : vector<16x32xf32>
    %140 = tpu.matmul %139, %13, %cst_49 {dimension_numbers = #tpu.dot_dimension_numbers<[1], [0], [0], [1], [0, 0, 1, 1], [], []>} : vector<16x32xbf16>, vector<32x32xbf16>, vector<16x32xf32> -> vector<16x32xf32>
    %141 = vector.broadcast %23 : vector<1x32xf32> to vector<16x32xf32>
    %142 = arith.addf %140, %141 : vector<16x32xf32>
    %143 = arith.truncf %134 : vector<8x32xf32> to vector<8x32xbf16>
    %144 = arith.truncf %138 : vector<16x32xf32> to vector<16x32xbf16>
    %145 = arith.truncf %142 : vector<16x32xf32> to vector<16x32xbf16>
    %146 = vector.extract_strided_slice %143 {offsets = [0, 0], sizes = [8, 8], strides = [1, 1]} : vector<8x32xbf16> to vector<8x8xbf16>
    %147 = vector.extract_strided_slice %144 {offsets = [0, 0], sizes = [16, 8], strides = [1, 1]} : vector<16x32xbf16> to vector<16x8xbf16>
    "tpu.trace_start"() <{level = 10 : i32, message = "qe,ke->qk"}> : () -> ()
    %cst_50 = arith.constant dense<0.000000e+00> : vector<8x16xf32>
    %148 = tpu.matmul %146, %147, %cst_50 {dimension_numbers = #tpu.dot_dimension_numbers<[1], [1], [0], [0], [0, 0, 1, 0], [], []>} : vector<8x8xbf16>, vector<16x8xbf16>, vector<8x16xf32> -> vector<8x16xf32>
    "tpu.trace_stop"() : () -> ()
    %cst_51 = arith.constant dense<0xFF800000> : vector<8xf32>
    %149 = vector.multi_reduction <maximumf>, %148, %cst_51 [1] : vector<8x16xf32> to vector<8xf32>
    %150 = vector.shape_cast %149 : vector<8xf32> to vector<8x1xf32>
    %151 = vector.broadcast %150 : vector<8x1xf32> to vector<8x16xf32>
    %152 = arith.subf %148, %151 : vector<8x16xf32>
    %153 = math.exp %152 : vector<8x16xf32>
    %cst_52 = arith.constant dense<0.000000e+00> : vector<8xf32>
    %154 = vector.multi_reduction <add>, %153, %cst_52 [1] : vector<8x16xf32> to vector<8xf32>
    %155 = vector.shape_cast %154 : vector<8xf32> to vector<8x1xf32>
    %156 = tpu.reciprocal %155 {approx = true} : vector<8x1xf32> -> vector<8x1xf32>
    %157 = vector.broadcast %156 : vector<8x1xf32> to vector<8x16xf32>
    %158 = arith.mulf %153, %157 : vector<8x16xf32>
    %159 = arith.truncf %158 : vector<8x16xf32> to vector<8x16xbf16>
    %160 = vector.extract_strided_slice %145 {offsets = [0, 0], sizes = [16, 8], strides = [1, 1]} : vector<16x32xbf16> to vector<16x8xbf16>
    "tpu.trace_start"() <{level = 10 : i32, message = "qk,ke->qe"}> : () -> ()
    %cst_53 = arith.constant dense<0.000000e+00> : vector<8x8xf32>
    %161 = tpu.matmul %159, %160, %cst_53 {dimension_numbers = #tpu.dot_dimension_numbers<[1], [0], [0], [1], [0, 0, 1, 1], [], []>} : vector<8x16xbf16>, vector<16x8xbf16>, vector<8x8xf32> -> vector<8x8xf32>
    "tpu.trace_stop"() : () -> ()
    %162 = vector.extract_strided_slice %143 {offsets = [0, 8], sizes = [8, 8], strides = [1, 1]} : vector<8x32xbf16> to vector<8x8xbf16>
    %163 = vector.extract_strided_slice %144 {offsets = [0, 8], sizes = [16, 8], strides = [1, 1]} : vector<16x32xbf16> to vector<16x8xbf16>
    "tpu.trace_start"() <{level = 10 : i32, message = "qe,ke->qk"}> : () -> ()
    %cst_54 = arith.constant dense<0.000000e+00> : vector<8x16xf32>
    %164 = tpu.matmul %162, %163, %cst_54 {dimension_numbers = #tpu.dot_dimension_numbers<[1], [1], [0], [0], [0, 0, 1, 0], [], []>} : vector<8x8xbf16>, vector<16x8xbf16>, vector<8x16xf32> -> vector<8x16xf32>
    "tpu.trace_stop"() : () -> ()
    %cst_55 = arith.constant dense<0xFF800000> : vector<8xf32>
    %165 = vector.multi_reduction <maximumf>, %164, %cst_55 [1] : vector<8x16xf32> to vector<8xf32>
    %166 = vector.shape_cast %165 : vector<8xf32> to vector<8x1xf32>
    %167 = vector.broadcast %166 : vector<8x1xf32> to vector<8x16xf32>
    %168 = arith.subf %164, %167 : vector<8x16xf32>
    %169 = math.exp %168 : vector<8x16xf32>
    %cst_56 = arith.constant dense<0.000000e+00> : vector<8xf32>
    %170 = vector.multi_reduction <add>, %169, %cst_56 [1] : vector<8x16xf32> to vector<8xf32>
    %171 = vector.shape_cast %170 : vector<8xf32> to vector<8x1xf32>
    %172 = tpu.reciprocal %171 {approx = true} : vector<8x1xf32> -> vector<8x1xf32>
    %173 = vector.broadcast %172 : vector<8x1xf32> to vector<8x16xf32>
    %174 = arith.mulf %169, %173 : vector<8x16xf32>
    %175 = arith.truncf %174 : vector<8x16xf32> to vector<8x16xbf16>
    %176 = vector.extract_strided_slice %145 {offsets = [0, 8], sizes = [16, 8], strides = [1, 1]} : vector<16x32xbf16> to vector<16x8xbf16>
    "tpu.trace_start"() <{level = 10 : i32, message = "qk,ke->qe"}> : () -> ()
    %cst_57 = arith.constant dense<0.000000e+00> : vector<8x8xf32>
    %177 = tpu.matmul %175, %176, %cst_57 {dimension_numbers = #tpu.dot_dimension_numbers<[1], [0], [0], [1], [0, 0, 1, 1], [], []>} : vector<8x16xbf16>, vector<16x8xbf16>, vector<8x8xf32> -> vector<8x8xf32>
    "tpu.trace_stop"() : () -> ()
    %178 = vector.extract_strided_slice %143 {offsets = [0, 16], sizes = [8, 8], strides = [1, 1]} : vector<8x32xbf16> to vector<8x8xbf16>
    %179 = vector.extract_strided_slice %144 {offsets = [0, 16], sizes = [16, 8], strides = [1, 1]} : vector<16x32xbf16> to vector<16x8xbf16>
    "tpu.trace_start"() <{level = 10 : i32, message = "qe,ke->qk"}> : () -> ()
    %cst_58 = arith.constant dense<0.000000e+00> : vector<8x16xf32>
    %180 = tpu.matmul %178, %179, %cst_58 {dimension_numbers = #tpu.dot_dimension_numbers<[1], [1], [0], [0], [0, 0, 1, 0], [], []>} : vector<8x8xbf16>, vector<16x8xbf16>, vector<8x16xf32> -> vector<8x16xf32>
    "tpu.trace_stop"() : () -> ()
    %cst_59 = arith.constant dense<0xFF800000> : vector<8xf32>
    %181 = vector.multi_reduction <maximumf>, %180, %cst_59 [1] : vector<8x16xf32> to vector<8xf32>
    %182 = vector.shape_cast %181 : vector<8xf32> to vector<8x1xf32>
    %183 = vector.broadcast %182 : vector<8x1xf32> to vector<8x16xf32>
    %184 = arith.subf %180, %183 : vector<8x16xf32>
    %185 = math.exp %184 : vector<8x16xf32>
    %cst_60 = arith.constant dense<0.000000e+00> : vector<8xf32>
    %186 = vector.multi_reduction <add>, %185, %cst_60 [1] : vector<8x16xf32> to vector<8xf32>
    %187 = vector.shape_cast %186 : vector<8xf32> to vector<8x1xf32>
    %188 = tpu.reciprocal %187 {approx = true} : vector<8x1xf32> -> vector<8x1xf32>
    %189 = vector.broadcast %188 : vector<8x1xf32> to vector<8x16xf32>
    %190 = arith.mulf %185, %189 : vector<8x16xf32>
    %191 = arith.truncf %190 : vector<8x16xf32> to vector<8x16xbf16>
    %192 = vector.extract_strided_slice %145 {offsets = [0, 16], sizes = [16, 8], strides = [1, 1]} : vector<16x32xbf16> to vector<16x8xbf16>
    "tpu.trace_start"() <{level = 10 : i32, message = "qk,ke->qe"}> : () -> ()
    %cst_61 = arith.constant dense<0.000000e+00> : vector<8x8xf32>
    %193 = tpu.matmul %191, %192, %cst_61 {dimension_numbers = #tpu.dot_dimension_numbers<[1], [0], [0], [1], [0, 0, 1, 1], [], []>} : vector<8x16xbf16>, vector<16x8xbf16>, vector<8x8xf32> -> vector<8x8xf32>
    "tpu.trace_stop"() : () -> ()
    %194 = vector.extract_strided_slice %143 {offsets = [0, 24], sizes = [8, 8], strides = [1, 1]} : vector<8x32xbf16> to vector<8x8xbf16>
    %195 = vector.extract_strided_slice %144 {offsets = [0, 24], sizes = [16, 8], strides = [1, 1]} : vector<16x32xbf16> to vector<16x8xbf16>
    "tpu.trace_start"() <{level = 10 : i32, message = "qe,ke->qk"}> : () -> ()
    %cst_62 = arith.constant dense<0.000000e+00> : vector<8x16xf32>
    %196 = tpu.matmul %194, %195, %cst_62 {dimension_numbers = #tpu.dot_dimension_numbers<[1], [1], [0], [0], [0, 0, 1, 0], [], []>} : vector<8x8xbf16>, vector<16x8xbf16>, vector<8x16xf32> -> vector<8x16xf32>
    "tpu.trace_stop"() : () -> ()
    %cst_63 = arith.constant dense<0xFF800000> : vector<8xf32>
    %197 = vector.multi_reduction <maximumf>, %196, %cst_63 [1] : vector<8x16xf32> to vector<8xf32>
    %198 = vector.shape_cast %197 : vector<8xf32> to vector<8x1xf32>
    %199 = vector.broadcast %198 : vector<8x1xf32> to vector<8x16xf32>
    %200 = arith.subf %196, %199 : vector<8x16xf32>
    %201 = math.exp %200 : vector<8x16xf32>
    %cst_64 = arith.constant dense<0.000000e+00> : vector<8xf32>
    %202 = vector.multi_reduction <add>, %201, %cst_64 [1] : vector<8x16xf32> to vector<8xf32>
    %203 = vector.shape_cast %202 : vector<8xf32> to vector<8x1xf32>
    %204 = tpu.reciprocal %203 {approx = true} : vector<8x1xf32> -> vector<8x1xf32>
    %205 = vector.broadcast %204 : vector<8x1xf32> to vector<8x16xf32>
    %206 = arith.mulf %201, %205 : vector<8x16xf32>
    %207 = arith.truncf %206 : vector<8x16xf32> to vector<8x16xbf16>
    %208 = vector.extract_strided_slice %145 {offsets = [0, 24], sizes = [16, 8], strides = [1, 1]} : vector<16x32xbf16> to vector<16x8xbf16>
    "tpu.trace_start"() <{level = 10 : i32, message = "qk,ke->qe"}> : () -> ()
    %cst_65 = arith.constant dense<0.000000e+00> : vector<8x8xf32>
    %209 = tpu.matmul %207, %208, %cst_65 {dimension_numbers = #tpu.dot_dimension_numbers<[1], [0], [0], [1], [0, 0, 1, 1], [], []>} : vector<8x16xbf16>, vector<16x8xbf16>, vector<8x8xf32> -> vector<8x8xf32>
    "tpu.trace_stop"() : () -> ()
    %210 = tpu.concatenate %161, %177, %193, %209 in 1 : vector<8x8xf32>, vector<8x8xf32>, vector<8x8xf32>, vector<8x8xf32> -> vector<8x32xf32>
    %211 = arith.truncf %210 : vector<8x32xf32> to vector<8x32xbf16>
    %cst_66 = arith.constant dense<0.000000e+00> : vector<8x32xf32>
    %212 = tpu.matmul %211, %17, %cst_66 {dimension_numbers = #tpu.dot_dimension_numbers<[1], [0], [0], [1], [0, 0, 1, 1], [], []>} : vector<8x32xbf16>, vector<32x32xbf16>, vector<8x32xf32> -> vector<8x32xf32>
    %213 = vector.broadcast %25 : vector<1x32xf32> to vector<8x32xf32>
    %214 = arith.addf %212, %213 : vector<8x32xf32>
    %c0_67 = arith.constant 0 : index
    %c0_68 = arith.constant 0 : index
    %c0_69 = arith.constant 0 : index
    %215 = vector.load %arg8[%c0_67, %c0_68, %c0_69] : memref<1x8x32xf32, #tpu.memory_space<vmem>>, vector<1x8x32xf32>
    %216 = vector.shape_cast %215 : vector<1x8x32xf32> to vector<8x32xf32>
    %217 = vector.shape_cast %214 : vector<8x32xf32> to vector<1x8x32xf32>
    tpu.vector_store %arg8[%c0_67, %c0_68, %c0_69], %217 {strides = array<i32>} : memref<1x8x32xf32, #tpu.memory_space<vmem>>, vector<1x8x32xf32>,
    return
  }
  func.func @transform_0(%arg0: i32) -> (i32, i32) {
    %c0_i32 = arith.constant 0 : i32
    %c0_i32_0 = arith.constant 0 : i32
    %c0_i32_1 = arith.constant 0 : i32
    return %c0_i32, %c0_i32_0 : i32, i32
  }
  func.func @transform_1(%arg0: i32) -> (i32, i32, i32) {
    %c0_i32 = arith.constant 0 : i32
    %c0_i32_0 = arith.constant 0 : i32
    %c0_i32_1 = arith.constant 0 : i32
    return %arg0, %c0_i32, %c0_i32_0 : i32, i32, i32
  }
  func.func @transform_2(%arg0: i32) -> (i32, i32, i32) {
    %c0_i32 = arith.constant 0 : i32
    %c0_i32_0 = arith.constant 0 : i32
    %c0_i32_1 = arith.constant 0 : i32
    return %arg0, %c0_i32, %c0_i32_0 : i32, i32, i32
  }
  func.func @transform_3(%arg0: i32) -> (i32, i32, i32) {
    %c0_i32 = arith.constant 0 : i32
    %c0_i32_0 = arith.constant 0 : i32
    %c0_i32_1 = arith.constant 0 : i32
    return %arg0, %c0_i32, %c0_i32_0 : i32, i32, i32
  }
  func.func @transform_4(%arg0: i32) -> (i32, i32) {
    %c0_i32 = arith.constant 0 : i32
    %c0_i32_0 = arith.constant 0 : i32
    %c0_i32_1 = arith.constant 0 : i32
    return %c0_i32, %c0_i32_0 : i32, i32
  }
  func.func @transform_5(%arg0: i32) -> (i32, i32, i32) {
    %c0_i32 = arith.constant 0 : i32
    %c0_i32_0 = arith.constant 0 : i32
    %c0_i32_1 = arith.constant 0 : i32
    %c0_i32_2 = arith.constant 0 : i32
    return %c0_i32, %c0_i32_0, %c0_i32_1 : i32, i32, i32
  }
  func.func @transform_6(%arg0: i32) -> (i32, i32) {
    %c0_i32 = arith.constant 0 : i32
    %c0_i32_0 = arith.constant 0 : i32
    %c0_i32_1 = arith.constant 0 : i32
    return %c0_i32, %c0_i32_0 : i32, i32
  }
  func.func @transform_7(%arg0: i32) -> (i32, i32, i32) {
    %c0_i32 = arith.constant 0 : i32
    %c0_i32_0 = arith.constant 0 : i32
    %c0_i32_1 = arith.constant 0 : i32
    return %arg0, %c0_i32, %c0_i32_0 : i32, i32, i32
  }
}

</mosaic_0001>

<llo_original>
// kernel: tpu_custom_call.1
$region0: #{tpu_custom_call.1}
  #allocation0 [shape = 'u32[]', space=smem, size = 0x4, offset = 0x4, fixed_abs, tag = 'smem constant byte address 0x4 - core index']
  #allocation1 [shape = 'u32[144,128]{1,0:T(1,128)}', space=vmem, size = 0x12000, scoped, tag = 'internal scratch']
  %s0 = inlined_call_operand.hbm [shape: f32[8,32], index: 0, kind: input, shape index: {}]
  %s1 = inlined_call_operand.hbm [shape: f32[2,8,32], index: 1, kind: input, shape index: {}]
  %s2 = inlined_call_operand.hbm [shape: f32[2,16,32], index: 2, kind: input, shape index: {}]
  %s3 = inlined_call_operand.hbm [shape: f32[2,16,32], index: 3, kind: input, shape index: {}]
  %s4 = inlined_call_operand.hbm [shape: bf16[32,64], index: 4, kind: input, shape index: {}]
  %s5 = inlined_call_operand.hbm [shape: bf16[5,32,32], index: 5, kind: input, shape index: {}]
  %s6 = inlined_call_operand.vmem [shape: f32[9,32], index: 6, kind: input, shape index: {}]
  %s7 = inlined_call_operand.hbm [shape: f32[2,8,32], index: 7, kind: output, shape index: {}]
  %s8 = sld [smem:[#allocation0]]
  $region85: #{tpu_custom_call.1} parent=0
    _
  %s10 = ssub.s32 1, %s8
  %s11 = scalar_select 0, %s10, %s8
  $region1: #{tpu_custom_call.1} parent=0
    #allocation2 [shape = 'u8[4096]{0}', space=vmem, size = 0x1000, scoped, tag = 'input window, operand 0, single buffered']
    #allocation3 [shape = 's32[2]{0}', space=sflag, size = 0x8, scoped, tag = 'scoped memory for tpu_custom_call.1']
    #allocation4 [shape = 's32[2]{0}', space=sflag, size = 0x8, scoped, tag = 'scoped memory for tpu_custom_call.1']
    #allocation5 [shape = 'u8[8192]{0}', space=vmem, size = 0x2000, scoped, tag = 'input window, operand 1']
    #allocation6 [shape = 's32[2]{0}', space=sflag, size = 0x8, scoped, tag = 'scoped memory for tpu_custom_call.1']
    #allocation7 [shape = 'u8[16384]{0}', space=vmem, size = 0x4000, scoped, tag = 'input window, operand 2']
    #allocation8 [shape = 'u8[16384]{0}', space=vmem, size = 0x4000, scoped, tag = 'input window, operand 3']
    #allocation9 [shape = 's32[2]{0}', space=sflag, size = 0x8, scoped, tag = 'scoped memory for tpu_custom_call.1']
    #allocation10 [shape = 'u8[8192]{0}', space=vmem, size = 0x2000, scoped, tag = 'input window, operand 4, single buffered']
    #allocation11 [shape = 'u8[40960]{0}', space=vmem, size = 0xa000, scoped, tag = 'input window, operand 5, single buffered']
    #allocation12 [shape = 's32[1]{0}', space=sflag, size = 0x4, scoped, tag = 'scoped memory for tpu_custom_call.1']
    #allocation13 [shape = 'u8[8192]{0}', space=vmem, size = 0x2000, scoped, tag = 'output window, operand 0']
    %12 = vsyncpa [#allocation3], 0
    %13 = vsyncpa [#allocation6], 0
    %s14 = scalar_lea.sflag [#allocation6], 1
    %15 = vsyncpa %s14, 0
    %16 = vsyncpa [#allocation9], 0
    %s17 = scalar_lea.sflag [#allocation9], 1
    %18 = vsyncpa %s17, 0
    %19 = vsyncpa [#allocation12], 0
    %20 = vsyncpa [#allocation4], 0
    %s21 = scalar_lea.sflag [#allocation4], 1
    %22 = vsyncpa %s21, 0
    loop: start=0, step=1, limit=4
    $region2: #{tpu_custom_call.1} parent=1 // loop_pre_header
      _
    $region3: #{tpu_custom_call.1} parent=1 // loop_header
      %s24 = sphi 0, %s28
      %p25 = scmp.ge.s32.totalorder %s24, 4
      %s32 = sphi 0, %s32
      %s34 = sphi 0, %s32
      %s35 = sphi 0, %s34
      %s49 = sphi 0, %s35
      %s55 = sphi 0, %s57
      %s58 = sphi 0, %s55
      %s59 = sphi 0, %s58
      %s75 = sphi 0, %s59
      %s81 = sphi 0, %s83
      %s84 = sphi 0, %s81
      %s85 = sphi 0, %s84
      %s101 = sphi 0, %s85
      %s107 = sphi 0, %s109
      %s110 = sphi 0, %s107
      %s111 = sphi 0, %s110
      %s127 = sphi 0, %s111
      %s131 = sphi 0, %s131
      %s133 = sphi 0, %s131
      %s134 = sphi 0, %s133
      %s148 = sphi 0, %s134
      %s152 = sphi 0, %s152
      %s154 = sphi 0, %s152
      %s155 = sphi 0, %s154
      %s169 = sphi 0, %s155
      %s173 = sphi 0, %s173
      %s175 = sphi 0, %s173
      %s176 = sphi 0, %s175
      %s190 = sphi 0, %s176
      %s196 = sphi 0, %s198
      %s199 = sphi 0, %s196
      %s200 = sphi 0, %s199
      %s216 = sphi 0, %s200
    $region4: #{tpu_custom_call.1} parent=1 // loop_header_branch
      %27 = sbr.rel (%p25) target = $region8
    $region5: #{tpu_custom_call.1} parent=1 // loop_body
      %s29 = ssub.s32 %s24, 1
      %s30 = ssub.s32 %s24, 2
      %s31 = sadd.s32 %s24, 1
      %s33 = sadd.s32 %s32, 1
      %p36 = scmp.eq.s32.totalorder %s24, 1
      %p37 = scmp.ne.s32.totalorder %s32, %s34
      %p38 = scmp.eq.s32.totalorder %s24, 0
      %p39 = por %p37, %p38
      %p40 = scmp.ne.s32.totalorder %s32, %s34
      %p41 = scmp.eq.s32.totalorder %s29, 1
      %p42 = por %p40, %p41
      %p43 = scmp.ne.s32.totalorder %s34, %s35
      %p44 = scmp.eq.s32.totalorder %s29, 0
      %p45 = por %p43, %p44
      %p46 = scmp.ne.s32.totalorder %s34, %s35
      %p47 = scmp.eq.s32.totalorder %s30, 1
      %p48 = por %p46, %p47
      %p50 = scmp.ne.s32.totalorder %s35, %s49
      %p51 = scmp.eq.s32.totalorder %s30, 0
      %p52 = por %p50, %p51
      %s53 = ssub.s32 %s24, %s31
      %p54 = scmp.eq.s32.totalorder %s53, 0
      %s56 = sadd.s32 %s55, 1
      %s57 = scalar_select %p54, %s55, %s56
      %p60 = pneg %p54
      %p61 = scmp.eq.s32.totalorder %s24, 1
      %p62 = por %p60, %p61
      %p63 = scmp.ne.s32.totalorder %s55, %s58
      %p64 = scmp.eq.s32.totalorder %s24, 0
      %p65 = por %p63, %p64
      %p66 = scmp.ne.s32.totalorder %s55, %s58
      %p67 = scmp.eq.s32.totalorder %s29, 1
      %p68 = por %p66, %p67
      %p69 = scmp.ne.s32.totalorder %s58, %s59
      %p70 = scmp.eq.s32.totalorder %s29, 0
      %p71 = por %p69, %p70
      %p72 = scmp.ne.s32.totalorder %s58, %s59
      %p73 = scmp.eq.s32.totalorder %s30, 1
      %p74 = por %p72, %p73
      %p76 = scmp.ne.s32.totalorder %s59, %s75
      %p77 = scmp.eq.s32.totalorder %s30, 0
      %p78 = por %p76, %p77
      %s79 = ssub.s32 %s24, %s31
      %p80 = scmp.eq.s32.totalorder %s79, 0
      %s82 = sadd.s32 %s81, 1
      %s83 = scalar_select %p80, %s81, %s82
      %p86 = pneg %p80
      %p87 = scmp.eq.s32.totalorder %s24, 1
      %p88 = por %p86, %p87
      %p89 = scmp.ne.s32.totalorder %s81, %s84
      %p90 = scmp.eq.s32.totalorder %s24, 0
      %p91 = por %p89, %p90
      %p92 = scmp.ne.s32.totalorder %s81, %s84
      %p93 = scmp.eq.s32.totalorder %s29, 1
      %p94 = por %p92, %p93
      %p95 = scmp.ne.s32.totalorder %s84, %s85
      %p96 = scmp.eq.s32.totalorder %s29, 0
      %p97 = por %p95, %p96
      %p98 = scmp.ne.s32.totalorder %s84, %s85
      %p99 = scmp.eq.s32.totalorder %s30, 1
      %p100 = por %p98, %p99
      %p102 = scmp.ne.s32.totalorder %s85, %s101
      %p103 = scmp.eq.s32.totalorder %s30, 0
      %p104 = por %p102, %p103
      %s105 = ssub.s32 %s24, %s31
      %p106 = scmp.eq.s32.totalorder %s105, 0
      %s108 = sadd.s32 %s107, 1
      %s109 = scalar_select %p106, %s107, %s108
      %p112 = pneg %p106
      %p113 = scmp.eq.s32.totalorder %s24, 1
      %p114 = por %p112, %p113
      %p115 = scmp.ne.s32.totalorder %s107, %s110
      %p116 = scmp.eq.s32.totalorder %s24, 0
      %p117 = por %p115, %p116
      %p118 = scmp.ne.s32.totalorder %s107, %s110
      %p119 = scmp.eq.s32.totalorder %s29, 1
      %p120 = por %p118, %p119
      %p121 = scmp.ne.s32.totalorder %s110, %s111
      %p122 = scmp.eq.s32.totalorder %s29, 0
      %p123 = por %p121, %p122
      %p124 = scmp.ne.s32.totalorder %s110, %s111
      %p125 = scmp.eq.s32.totalorder %s30, 1
      %p126 = por %p124, %p125
      %p128 = scmp.ne.s32.totalorder %s111, %s127
      %p129 = scmp.eq.s32.totalorder %s30, 0
      %p130 = por %p128, %p129
      %s132 = sadd.s32 %s131, 1
      %p135 = scmp.eq.s32.totalorder %s24, 1
      %p136 = scmp.ne.s32.totalorder %s131, %s133
      %p137 = scmp.eq.s32.totalorder %s24, 0
      %p138 = por %p136, %p137
      %p139 = scmp.ne.s32.totalorder %s131, %s133
      %p140 = scmp.eq.s32.totalorder %s29, 1
      %p141 = por %p139, %p140
      %p142 = scmp.ne.s32.totalorder %s133, %s134
      %p143 = scmp.eq.s32.totalorder %s29, 0
      %p144 = por %p142, %p143
      %p145 = scmp.ne.s32.totalorder %s133, %s134
      %p146 = scmp.eq.s32.totalorder %s30, 1
      %p147 = por %p145, %p146
      %p149 = scmp.ne.s32.totalorder %s134, %s148
      %p150 = scmp.eq.s32.totalorder %s30, 0
      %p151 = por %p149, %p150
      %s153 = sadd.s32 %s152, 1
      %p156 = scmp.eq.s32.totalorder %s24, 1
      %p157 = scmp.ne.s32.totalorder %s152, %s154
      %p158 = scmp.eq.s32.totalorder %s24, 0
      %p159 = por %p157, %p158
      %p160 = scmp.ne.s32.totalorder %s152, %s154
      %p161 = scmp.eq.s32.totalorder %s29, 1
      %p162 = por %p160, %p161
      %p163 = scmp.ne.s32.totalorder %s154, %s155
      %p164 = scmp.eq.s32.totalorder %s29, 0
      %p165 = por %p163, %p164
      %p166 = scmp.ne.s32.totalorder %s154, %s155
      %p167 = scmp.eq.s32.totalorder %s30, 1
      %p168 = por %p166, %p167
      %p170 = scmp.ne.s32.totalorder %s155, %s169
      %p171 = scmp.eq.s32.totalorder %s30, 0
      %p172 = por %p170, %p171
      %s174 = sadd.s32 %s173, 1
      %p177 = scmp.eq.s32.totalorder %s24, 1
      %p178 = scmp.ne.s32.totalorder %s173, %s175
      %p179 = scmp.eq.s32.totalorder %s24, 0
      %p180 = por %p178, %p179
      %p181 = scmp.ne.s32.totalorder %s173, %s175
      %p182 = scmp.eq.s32.totalorder %s29, 1
      %p183 = por %p181, %p182
      %p184 = scmp.ne.s32.totalorder %s175, %s176
      %p185 = scmp.eq.s32.totalorder %s29, 0
      %p186 = por %p184, %p185
      %p187 = scmp.ne.s32.totalorder %s175, %s176
      %p188 = scmp.eq.s32.totalorder %s30, 1
      %p189 = por %p187, %p188
      %p191 = scmp.ne.s32.totalorder %s176, %s190
      %p192 = scmp.eq.s32.totalorder %s30, 0
      %p193 = por %p191, %p192
      %s194 = ssub.s32 %s24, %s31
      %p195 = scmp.eq.s32.totalorder %s194, 0
      %s197 = sadd.s32 %s196, 1
      %s198 = scalar_select %p195, %s196, %s197
      %p201 = pneg %p195
      %p202 = scmp.eq.s32.totalorder %s24, 1
      %p203 = por %p201, %p202
      %p204 = scmp.ne.s32.totalorder %s196, %s199
      %p205 = scmp.eq.s32.totalorder %s24, 0
      %p206 = por %p204, %p205
      %p207 = scmp.ne.s32.totalorder %s196, %s199
      %p208 = scmp.eq.s32.totalorder %s29, 1
      %p209 = por %p207, %p208
      %p210 = scmp.ne.s32.totalorder %s199, %s200
      %p211 = scmp.eq.s32.totalorder %s29, 0
      %p212 = por %p210, %p211
      %p213 = scmp.ne.s32.totalorder %s199, %s200
      %p214 = scmp.eq.s32.totalorder %s30, 1
      %p215 = por %p213, %p214
      %p217 = scmp.ne.s32.totalorder %s200, %s216
      %p218 = scmp.eq.s32.totalorder %s30, 0
      %p219 = por %p217, %p218
      %p220 = scmp.le.s32.totalorder 1, %s24
      %p221 = scmp.lt.s32.totalorder %s24, 3
      %p222 = pnand %p220, %p221
      %p223 = pneg %p222
      // Predicated region
      $region9: #{tpu_custom_call.1} parent=5 // pred_check
        _
      $region10: #{tpu_custom_call.1} parent=5 // pred_check_branch
        %225 = sbr.rel (%p222) target = $region12
      $region11: #{tpu_custom_call.1} parent=5 // pred_region
        %s226 = ssub.s32 %s24, 1
        // Predicated region
        $region13: #{tpu_custom_call.1} parent=11 // pred_check
          %p227 = pneg %p45
        $region14: #{tpu_custom_call.1} parent=11 // pred_check_branch
          %229 = sbr.rel (%p227) target = $region16
        $region15: #{tpu_custom_call.1} parent=11 // pred_region
          %s231 = ssub.s32 128, 128
          %232 = vsyncadd [#allocation3], %s231
          %s234 = sshll.u32 [#allocation2], 4
          %s235 = int_to_ptr.vmem [resolvable:$true] %s234
          %237 = dma.hbm_to_vmem [thread:$0]  %s0, 128, %s235, [#allocation3]
        $region16: #{tpu_custom_call.1} parent=11 // pred_fallthru
          _
        // Predicated region
        $region17: #{tpu_custom_call.1} parent=11 // pred_check
          %p238 = pneg %p144
        $region18: #{tpu_custom_call.1} parent=11 // pred_check_branch
          %240 = sbr.rel (%p238) target = $region20
        $region19: #{tpu_custom_call.1} parent=11 // pred_region
          %s242 = ssub.s32 256, 256
          %243 = vsyncadd [#allocation9], %s242
          %s244 = sshll.u32 [#allocation10], 4
          %s245 = int_to_ptr.vmem [resolvable:$true] %s244
          %250 = dma.hbm_to_vmem [thread:$0]  %s4, 256, %s245, [#allocation9], 64, 64, 4
        $region20: #{tpu_custom_call.1} parent=11 // pred_fallthru
          _
        // Predicated region
        $region21: #{tpu_custom_call.1} parent=11 // pred_check
          %p251 = pneg %p165
        $region22: #{tpu_custom_call.1} parent=11 // pred_check_branch
          %253 = sbr.rel (%p251) target = $region24
        $region23: #{tpu_custom_call.1} parent=11 // pred_region
          %s255 = ssub.s32 1280, 1280
          %256 = vsyncadd [#allocation12], %s255
          %s257 = sshll.u32 [#allocation11], 4
          %s258 = int_to_ptr.vmem [resolvable:$true] %s257
          %263 = dma.hbm_to_vmem [thread:$0]  %s5, 1280, %s258, [#allocation12], 64, 64, 4
        $region24: #{tpu_custom_call.1} parent=11 // pred_fallthru
          _
        // Predicated region
        $region25: #{tpu_custom_call.1} parent=11 // pred_check
          %p264 = pneg %p186
        $region26: #{tpu_custom_call.1} parent=11 // pred_check_branch
          %266 = sbr.rel (%p264) target = $region28
        $region27: #{tpu_custom_call.1} parent=11 // pred_region
          _
        $region28: #{tpu_custom_call.1} parent=11 // pred_fallthru
          _
      $region12: #{tpu_custom_call.1} parent=5 // pred_fallthru
        _
      %p267 = scmp.lt.s32.totalorder %s24, 2
      // Predicated region
      $region29: #{tpu_custom_call.1} parent=5 // pred_check
        %p268 = pneg %p267
      $region30: #{tpu_custom_call.1} parent=5 // pred_check_branch
        %270 = sbr.rel (%p268) target = $region32
      $region31: #{tpu_custom_call.1} parent=5 // pred_region
        // Predicated region
        $region33: #{tpu_custom_call.1} parent=31 // pred_check
          %p271 = pneg %p65
        $region34: #{tpu_custom_call.1} parent=31 // pred_check_branch
          %273 = sbr.rel (%p271) target = $region36
        $region35: #{tpu_custom_call.1} parent=31 // pred_region
          %s274 = sand.u32 %s24, 1
          %s275 = scalar_lea.sflag [#allocation6], %s274
          %s276 = sand.u32 %s55, 1
          %s277 = smul.addr %s276, 8
          %s278 = scalar_lea.vmem [#allocation5], %s277
          %s280 = ssub.s32 128, 128
          %281 = vsyncadd %s275, %s280
          %s282 = smul.addr %s24, 128
          %s283 = scalar_lea.hbm %s1, %s282
          %s285 = sshll.u32 %s278, 4
          %s286 = int_to_ptr.vmem [resolvable:$true] %s285
          %288 = dma.hbm_to_vmem [thread:$0]  %s283, 128, %s286, %s275
        $region36: #{tpu_custom_call.1} parent=31 // pred_fallthru
          _
        // Predicated region
        $region37: #{tpu_custom_call.1} parent=31 // pred_check
          %p289 = pneg %p91
        $region38: #{tpu_custom_call.1} parent=31 // pred_check_branch
          %291 = sbr.rel (%p289) target = $region40
        $region39: #{tpu_custom_call.1} parent=31 // pred_region
          %s292 = sand.u32 %s24, 1
          %s293 = scalar_lea.sflag [#allocation6], %s292
          %s294 = sand.u32 %s81, 1
          %s295 = smul.addr %s294, 16
          %s296 = scalar_lea.vmem [#allocation7], %s295
          %s298 = ssub.s32 256, 256
          %299 = vsyncadd %s293, %s298
          %s300 = smul.addr %s24, 2
          %s301 = smul.addr %s300, 128
          %s302 = scalar_lea.hbm %s2, %s301
          %s303 = sshll.u32 %s296, 4
          %s304 = int_to_ptr.vmem [resolvable:$true] %s303
          %309 = dma.hbm_to_vmem [thread:$0]  %s302, 256, %s304, %s293, 128, 128, 8
        $region40: #{tpu_custom_call.1} parent=31 // pred_fallthru
          _
        // Predicated region
        $region41: #{tpu_custom_call.1} parent=31 // pred_check
          %p310 = pneg %p117
        $region42: #{tpu_custom_call.1} parent=31 // pred_check_branch
          %312 = sbr.rel (%p310) target = $region44
        $region43: #{tpu_custom_call.1} parent=31 // pred_region
          %s313 = sand.u32 %s24, 1
          %s314 = scalar_lea.sflag [#allocation9], %s313
          %s315 = sand.u32 %s107, 1
          %s316 = smul.addr %s315, 16
          %s317 = scalar_lea.vmem [#allocation8], %s316
          %s319 = ssub.s32 256, 256
          %320 = vsyncadd %s314, %s319
          %s321 = smul.addr %s24, 2
          %s322 = smul.addr %s321, 128
          %s323 = scalar_lea.hbm %s3, %s322
          %s324 = sshll.u32 %s317, 4
          %s325 = int_to_ptr.vmem [resolvable:$true] %s324
          %330 = dma.hbm_to_vmem [thread:$0]  %s323, 256, %s325, %s314, 128, 128, 8
        $region44: #{tpu_custom_call.1} parent=31 // pred_fallthru
          _
      $region32: #{tpu_custom_call.1} parent=5 // pred_fallthru
        _
      %p331 = scmp.le.s32.totalorder 1, %s24
      %p332 = scmp.lt.s32.totalorder %s24, 3
      %p333 = pnand %p331, %p332
      %p334 = pneg %p333
      // Predicated region
      $region45: #{tpu_custom_call.1} parent=5 // pred_check
        _
      $region46: #{tpu_custom_call.1} parent=5 // pred_check_branch
        %336 = sbr.rel (%p333) target = $region48
      $region47: #{tpu_custom_call.1} parent=5 // pred_region
        %s337 = ssub.s32 %s24, 1
        // Predicated region
        $region49: #{tpu_custom_call.1} parent=47 // pred_check
          %p338 = pneg %p45
        $region50: #{tpu_custom_call.1} parent=47 // pred_check_branch
          %340 = sbr.rel (%p338) target = $region52
        $region51: #{tpu_custom_call.1} parent=47 // pred_region
          %341 = dma.done [#allocation3], 128
        $region52: #{tpu_custom_call.1} parent=47 // pred_fallthru
          _
        %s342 = sand.u32 %s29, 1
        %s343 = scalar_lea.sflag [#allocation6], %s342
        %s344 = sand.u32 %s58, 1
        %s345 = smul.addr %s344, 8
        %s346 = scalar_lea.vmem [#allocation5], %s345
        // Predicated region
        $region53: #{tpu_custom_call.1} parent=47 // pred_check
          %p347 = pneg %p71
        $region54: #{tpu_custom_call.1} parent=47 // pred_check_branch
          %349 = sbr.rel (%p347) target = $region56
        $region55: #{tpu_custom_call.1} parent=47 // pred_region
          %350 = dma.done %s343, 128
        $region56: #{tpu_custom_call.1} parent=47 // pred_fallthru
          _
        %s351 = sand.u32 %s29, 1
        %s352 = scalar_lea.sflag [#allocation6], %s351
        %s353 = sand.u32 %s84, 1
        %s354 = smul.addr %s353, 16
        %s355 = scalar_lea.vmem [#allocation7], %s354
        // Predicated region
        $region57: #{tpu_custom_call.1} parent=47 // pred_check
          %p356 = pneg %p97
        $region58: #{tpu_custom_call.1} parent=47 // pred_check_branch
          %358 = sbr.rel (%p356) target = $region60
        $region59: #{tpu_custom_call.1} parent=47 // pred_region
          %359 = dma.done %s352, 256
        $region60: #{tpu_custom_call.1} parent=47 // pred_fallthru
          _
        %s360 = sand.u32 %s29, 1
        %s361 = scalar_lea.sflag [#allocation9], %s360
        %s362 = sand.u32 %s110, 1
        %s363 = smul.addr %s362, 16
        %s364 = scalar_lea.vmem [#allocation8], %s363
        // Predicated region
        $region61: #{tpu_custom_call.1} parent=47 // pred_check
          %p365 = pneg %p123
        $region62: #{tpu_custom_call.1} parent=47 // pred_check_branch
          %367 = sbr.rel (%p365) target = $region64
        $region63: #{tpu_custom_call.1} parent=47 // pred_region
          %368 = dma.done %s361, 256
        $region64: #{tpu_custom_call.1} parent=47 // pred_fallthru
          _
        // Predicated region
        $region65: #{tpu_custom_call.1} parent=47 // pred_check
          %p369 = pneg %p144
        $region66: #{tpu_custom_call.1} parent=47 // pred_check_branch
          %371 = sbr.rel (%p369) target = $region68
        $region67: #{tpu_custom_call.1} parent=47 // pred_region
          %372 = dma.done [#allocation9], 256
        $region68: #{tpu_custom_call.1} parent=47 // pred_fallthru
          _
        // Predicated region
        $region69: #{tpu_custom_call.1} parent=47 // pred_check
          %p373 = pneg %p165
        $region70: #{tpu_custom_call.1} parent=47 // pred_check_branch
          %375 = sbr.rel (%p373) target = $region72
        $region71: #{tpu_custom_call.1} parent=47 // pred_region
          %376 = dma.done [#allocation12], 1280
        $region72: #{tpu_custom_call.1} parent=47 // pred_fallthru
          _
        %p377 = pneg %p45
        %p378 = pneg %p42
        %s379 = sand.u32 %s29, 1
        %s380 = scalar_lea.sflag [#allocation6], %s379
        %s381 = sand.u32 %s58, 1
        %s382 = smul.addr %s381, 8
        %s383 = scalar_lea.vmem [#allocation5], %s382
        %p384 = pneg %p71
        %p385 = pneg %p68
        %s386 = sand.u32 %s29, 1
        %s387 = scalar_lea.sflag [#allocation6], %s386
        %s388 = sand.u32 %s84, 1
        %s389 = smul.addr %s388, 16
        %s390 = scalar_lea.vmem [#allocation7], %s389
        %p391 = pneg %p97
        %p392 = pneg %p94
        %s393 = sand.u32 %s29, 1
        %s394 = scalar_lea.sflag [#allocation9], %s393
        %s395 = sand.u32 %s110, 1
        %s396 = smul.addr %s395, 16
        %s397 = scalar_lea.vmem [#allocation8], %s396
        %p398 = pneg %p123
        %p399 = pneg %p120
        %p400 = pneg %p144
        %p401 = pneg %p141
        %p402 = pneg %p165
        %p403 = pneg %p162
        %p404 = pneg %p186
        %p405 = pneg %p183
        %p406 = pneg %p212
        %p407 = pneg %p209
        %s408 = sand.u32 %s199, 1
        %s409 = scalar_lea.sflag [#allocation4], %s408
        %s410 = sand.u32 %s199, 1
        %s411 = smul.addr %s410, 8
        %s412 = scalar_lea.vmem [#allocation13], %s411
        %v414 = vld [vmem:[#allocation2] sm:$0xff]
        %v415 = vld [vmem:[%s346] sm:$0xff]
        %v416 = vld [vmem:[%s355] sm:$0xff]
        %v417 = vld [vmem:[%s355 + $0x8] sm:$0xff]
        %v418 = vld [vmem:[%s364] sm:$0xff]
        %v419 = vld [vmem:[%s364 + $0x8] sm:$0xff]
        %v420 = vld [vmem:[#allocation10] sm:$0xf]
        %v421 = vld [vmem:[#allocation10 + $0x4] sm:$0xf]
        %v422 = vld [vmem:[#allocation10 + $0x8] sm:$0xf]
        %v423 = vld [vmem:[#allocation10 + $0xc] sm:$0xf]
        %v424 = vld [vmem:[#allocation11] sm:$0xf]
        %v425 = vld [vmem:[#allocation11 + $0x4] sm:$0xf]
        %v426 = vld [vmem:[#allocation11 + $0x8] sm:$0xf]
        %v427 = vld [vmem:[#allocation11 + $0xc] sm:$0xf]
        %s428 = scalar_lea.vmem [#allocation11], 16
        %v429 = vld [vmem:[%s428] sm:$0xf]
        %v430 = vld [vmem:[%s428 + $0x4] sm:$0xf]
        %v431 = vld [vmem:[%s428 + $0x8] sm:$0xf]
        %v432 = vld [vmem:[%s428 + $0xc] sm:$0xf]
        %s433 = scalar_lea.vmem [#allocation11], 32
        %v434 = vld [vmem:[%s433] sm:$0xf]
        %v435 = vld [vmem:[%s433 + $0x4] sm:$0xf]
        %v436 = vld [vmem:[%s433 + $0x8] sm:$0xf]
        %v437 = vld [vmem:[%s433 + $0xc] sm:$0xf]
        %s438 = scalar_lea.vmem [#allocation11], 48
        %v439 = vld [vmem:[%s438] sm:$0xf]
        %v440 = vld [vmem:[%s438 + $0x4] sm:$0xf]
        %v441 = vld [vmem:[%s438 + $0x8] sm:$0xf]
        %v442 = vld [vmem:[%s438 + $0xc] sm:$0xf]
        %s443 = scalar_lea.vmem [#allocation11], 64
        %v444 = vld [vmem:[%s443] sm:$0xf]
        %v445 = vld [vmem:[%s443 + $0x4] sm:$0xf]
        %v446 = vld [vmem:[%s443 + $0x8] sm:$0xf]
        %v447 = vld [vmem:[%s443 + $0xc] sm:$0xf]
        %v448 = vld [vmem:[%s6] sm:$0xff]
        %v449 = vld [vmem:[%s6 + $0x8] sm:$0x1]
        %v450 = vpack.c.bf16 %v415, %v415
        %v455 = vunpack.c.l.b16 %v420
        %v456 = vunpack.c.l.b16 %v421
        %v457 = vunpack.c.l.b16 %v422
        %v458 = vunpack.c.l.b16 %v423
        %v459 = vpack.c.b16 %v456, %v455
        %v460 = vpack.c.b16 %v458, %v457
        %vm463 = vcmask 261120
        %v465 = vsel %vm463, %v450, 0
        %467 = vmatprep.subr.bf16.mxu0 0
        %468 = vmatpush1.bf16.msra.mxu0 %v459
        %469 = vmatprep.subr.bf16.mxu0 0
        %470 = vmatpush1.bf16.msra.mxu0 %v460
        %471 = vmatprep.subr.bf16.mxu0 0
        %472 = vmatpush1.bf16.msra.mxu0 0
        %473 = vmatprep.subr.bf16.mxu0 0
        %474 = vmatpush1.bf16.msra.mxu0 0
        %475 = vmatprep.subr.bf16.mxu0 0
        %476 = vmatpush1.bf16.msra.mxu0 0
        %477 = vmatprep.subr.bf16.mxu0 0
        %478 = vmatpush1.bf16.msra.mxu0 0
        %479 = vmatprep.subr.bf16.mxu0 0
        %480 = vmatpush1.bf16.msra.mxu0 0
        %481 = vmatprep.subr.bf16.mxu0 0
        %482 = vmatpush1.bf16.msra.mxu0 0
        %483 = vmatprep.subr.bf16.mxu0 0
        %484 = vmatpush1.bf16.msra.mxu0 0
        %485 = vmatprep.subr.bf16.mxu0 0
        %486 = vmatpush1.bf16.msra.mxu0 0
        %487 = vmatprep.subr.bf16.mxu0 0
        %488 = vmatpush1.bf16.msra.mxu0 0
        %489 = vmatprep.subr.bf16.mxu0 0
        %490 = vmatpush1.bf16.msra.mxu0 0
        %491 = vmatprep.subr.bf16.mxu0 0
        %492 = vmatpush1.bf16.msra.mxu0 0
        %493 = vmatprep.subr.bf16.mxu0 0
        %494 = vmatpush1.bf16.msra.mxu0 0
        %495 = vmatprep.subr.bf16.mxu0 0
        %496 = vmatpush1.bf16.msra.mxu0 0
        %497 = vmatprep.subr.bf16.mxu0 0
        %498 = vmatpush1.bf16.msra.mxu0 0
        %499 = vmatprep.mubr.bf16.mxu0 0
        %500 = vmatmul.mubr.bf16.gmra.mrb[0].mxu0 %v465
        %v501 = vpop.f32.mrb[0].mxu0
        %v502 = vadd.f32 0.0, %v501
        %v503 = vpop.f32.mrb[0].mxu0
        %v504 = vpop.f32.mrb[0].mxu0
        %v505 = vpop.f32.mrb[0].mxu0
        %506 = vdwg.mxu0
        %v507 = vlaneseq
        %v508 = vshrl.u32 %v507, 7
        %v509 = vsub.s32 0, %v508
        %v510 = vrot.slane %v448, %v509
        %v511 = vadd.f32 %v502, %v510
        %v512 = vlaneseq
        %v513 = vshrl.u32 %v512, 7
        %v514 = vsub.s32 1, %v513
        %v515 = vrot.slane %v448, %v514
        %517 = vrot.lane.b32.xlu0 %v515, 32
        %v518 = vpop.permute.xlu0 %517
        %v520 = vadd.f32 %v502, %v518
        %v521 = vpack.c.bf16 %v414, %v414
        %v522 = vpack.c.bf16 %v511, %v511
        %v523 = vpack.c.bf16 %v520, %v520
        %vm524 = vcmask 64512
        %v526 = vsel %vm524, %v521, 0
        %v529 = vsel %vm524, %v522, 0
        %531 = vmatprep.subr.bf16.mxu0 0
        %532 = vmatpush1.bf16.xpose.msra.mxu0 %v529
        %533 = vmatprep.subr.bf16.mxu0 0
        %534 = vmatpush1.bf16.xpose.msra.mxu0 0
        %535 = vmatprep.subr.bf16.mxu0 0
        %536 = vmatpush1.bf16.xpose.msra.mxu0 0
        %537 = vmatprep.subr.bf16.mxu0 0
        %538 = vmatpush1.bf16.xpose.msra.mxu0 0
        %539 = vmatprep.subr.bf16.mxu0 0
        %540 = vmatpush1.bf16.xpose.msra.mxu0 0
        %541 = vmatprep.subr.bf16.mxu0 0
        %542 = vmatpush1.bf16.xpose.msra.mxu0 0
        %543 = vmatprep.subr.bf16.mxu0 0
        %544 = vmatpush1.bf16.xpose.msra.mxu0 0
        %545 = vmatprep.subr.bf16.mxu0 0
        %546 = vmatpush1.bf16.xpose.msra.mxu0 0
        %547 = vmatprep.subr.bf16.mxu0 0
        %548 = vmatpush1.bf16.xpose.msra.mxu0 0
        %549 = vmatprep.subr.bf16.mxu0 0
        %550 = vmatpush1.bf16.xpose.msra.mxu0 0
        %551 = vmatprep.subr.bf16.mxu0 0
        %552 = vmatpush1.bf16.xpose.msra.mxu0 0
        %553 = vmatprep.subr.bf16.mxu0 0
        %554 = vmatpush1.bf16.xpose.msra.mxu0 0
        %555 = vmatprep.subr.bf16.mxu0 0
        %556 = vmatpush1.bf16.xpose.msra.mxu0 0
        %557 = vmatprep.subr.bf16.mxu0 0
        %558 = vmatpush1.bf16.xpose.msra.mxu0 0
        %559 = vmatprep.subr.bf16.mxu0 0
        %560 = vmatpush1.bf16.xpose.msra.mxu0 0
        %561 = vmatprep.subr.bf16.mxu0 0
        %562 = vmatpush1.bf16.xpose.msra.mxu0 0
        %563 = vmatprep.mubr.bf16.mxu0 0
        %564 = vmatmul.mubr.bf16.gmra.mrb[0].mxu0 %v526
        %v565 = vpop.f32.mrb[0].mxu0
        %v566 = vadd.f32 0.0, %v565
        %v567 = vpop.f32.mrb[0].mxu0
        %v568 = vpop.f32.mrb[0].mxu0
        %v569 = vpop.f32.mrb[0].mxu0
        %570 = vdwg.mxu0
        %v571 = vsel %vm524, %v566, -inf
        %572 = vmax.xlane.f32.xlu0 %v571
        %v573 = vpop.xlane.xlu0 %572
        %v574 = vsub.f32 %v566, %v573
        %v575 = vmul.f32 %v574, 1.442695
        %v576 = vpow.pop %v575
        %v577 = vsel %vm524, %v576, 0.0
        %578 = vadd.xlane.f32.xlu0 %v577
        %v579 = vpop.xlane.xlu0 %578
        %v580 = vrcp.pop %v579
        %v581 = vmul.f32 %v576, %v580
        %v582 = vpack.c.bf16 %v581, %v581
        %584 = vrot.lane.b32.xlu0 %v523, 96
        %v585 = vpop.permute.xlu0 %584
        %v587 = vsel %vm524, %v582, 0
        %vm589 = vcmask 1043456
        %v591 = vsel %vm589, %v585, 0
        %593 = vmatprep.subr.bf16.mxu0 0
        %594 = vmatpush1.bf16.msra.mxu0 %v591
        %595 = vmatprep.subr.bf16.mxu0 0
        %596 = vmatpush1.bf16.msra.mxu0 0
        %597 = vmatprep.subr.bf16.mxu0 0
        %598 = vmatpush1.bf16.msra.mxu0 0
        %599 = vmatprep.subr.bf16.mxu0 0
        %600 = vmatpush1.bf16.msra.mxu0 0
        %601 = vmatprep.subr.bf16.mxu0 0
        %602 = vmatpush1.bf16.msra.mxu0 0
        %603 = vmatprep.subr.bf16.mxu0 0
        %604 = vmatpush1.bf16.msra.mxu0 0
        %605 = vmatprep.subr.bf16.mxu0 0
        %606 = vmatpush1.bf16.msra.mxu0 0
        %607 = vmatprep.subr.bf16.mxu0 0
        %608 = vmatpush1.bf16.msra.mxu0 0
        %609 = vmatprep.subr.bf16.mxu0 0
        %610 = vmatpush1.bf16.msra.mxu0 0
        %611 = vmatprep.subr.bf16.mxu0 0
        %612 = vmatpush1.bf16.msra.mxu0 0
        %613 = vmatprep.subr.bf16.mxu0 0
        %614 = vmatpush1.bf16.msra.mxu0 0
        %615 = vmatprep.subr.bf16.mxu0 0
        %616 = vmatpush1.bf16.msra.mxu0 0
        %617 = vmatprep.subr.bf16.mxu0 0
        %618 = vmatpush1.bf16.msra.mxu0 0
        %619 = vmatprep.subr.bf16.mxu0 0
        %620 = vmatpush1.bf16.msra.mxu0 0
        %621 = vmatprep.subr.bf16.mxu0 0
        %622 = vmatpush1.bf16.msra.mxu0 0
        %623 = vmatprep.subr.bf16.mxu0 0
        %624 = vmatpush1.bf16.msra.mxu0 0
        %625 = vmatprep.mubr.bf16.mxu0 0
        %626 = vmatmul.mubr.bf16.gmra.mrb[0].mxu0 %v587
        %v627 = vpop.f32.mrb[0].mxu0
        %v628 = vadd.f32 0.0, %v627
        %v629 = vpop.f32.mrb[0].mxu0
        %v630 = vpop.f32.mrb[0].mxu0
        %v631 = vpop.f32.mrb[0].mxu0
        %632 = vdwg.mxu0
        %634 = vrot.lane.b32.xlu0 %v521, 120
        %v635 = vpop.permute.xlu0 %634
        %637 = vrot.lane.b32.xlu0 %v522, 120
        %v638 = vpop.permute.xlu0 %637
        %v640 = vsel %vm524, %v635, 0
        %v643 = vsel %vm524, %v638, 0
        %645 = vmatprep.subr.bf16.mxu0 0
        %646 = vmatpush1.bf16.xpose.msra.mxu0 %v643
        %647 = vmatprep.subr.bf16.mxu0 0
        %648 = vmatpush1.bf16.xpose.msra.mxu0 0
        %649 = vmatprep.subr.bf16.mxu0 0
        %650 = vmatpush1.bf16.xpose.msra.mxu0 0
        %651 = vmatprep.subr.bf16.mxu0 0
        %652 = vmatpush1.bf16.xpose.msra.mxu0 0
        %653 = vmatprep.subr.bf16.mxu0 0
        %654 = vmatpush1.bf16.xpose.msra.mxu0 0
        %655 = vmatprep.subr.bf16.mxu0 0
        %656 = vmatpush1.bf16.xpose.msra.mxu0 0
        %657 = vmatprep.subr.bf16.mxu0 0
        %658 = vmatpush1.bf16.xpose.msra.mxu0 0
        %659 = vmatprep.subr.bf16.mxu0 0
        %660 = vmatpush1.bf16.xpose.msra.mxu0 0
        %661 = vmatprep.subr.bf16.mxu0 0
        %662 = vmatpush1.bf16.xpose.msra.mxu0 0
        %663 = vmatprep.subr.bf16.mxu0 0
        %664 = vmatpush1.bf16.xpose.msra.mxu0 0
        %665 = vmatprep.subr.bf16.mxu0 0
        %666 = vmatpush1.bf16.xpose.msra.mxu0 0
        %667 = vmatprep.subr.bf16.mxu0 0
        %668 = vmatpush1.bf16.xpose.msra.mxu0 0
        %669 = vmatprep.subr.bf16.mxu0 0
        %670 = vmatpush1.bf16.xpose.msra.mxu0 0
        %671 = vmatprep.subr.bf16.mxu0 0
        %672 = vmatpush1.bf16.xpose.msra.mxu0 0
        %673 = vmatprep.subr.bf16.mxu0 0
        %674 = vmatpush1.bf16.xpose.msra.mxu0 0
        %675 = vmatprep.subr.bf16.mxu0 0
        %676 = vmatpush1.bf16.xpose.msra.mxu0 0
        %677 = vmatprep.mubr.bf16.mxu0 0
        %678 = vmatmul.mubr.bf16.gmra.mrb[0].mxu0 %v640
        %v679 = vpop.f32.mrb[0].mxu0
        %v680 = vadd.f32 0.0, %v679
        %v681 = vpop.f32.mrb[0].mxu0
        %v682 = vpop.f32.mrb[0].mxu0
        %v683 = vpop.f32.mrb[0].mxu0
        %684 = vdwg.mxu0
        %v685 = vsel %vm524, %v680, -inf
        %686 = vmax.xlane.f32.xlu0 %v685
        %v687 = vpop.xlane.xlu0 %686
        %v688 = vsub.f32 %v680, %v687
        %v689 = vmul.f32 %v688, 1.442695
        %v690 = vpow.pop %v689
        %v691 = vsel %vm524, %v690, 0.0
        %692 = vadd.xlane.f32.xlu0 %v691
        %v693 = vpop.xlane.xlu0 %692
        %v694 = vrcp.pop %v693
        %v695 = vmul.f32 %v690, %v694
        %v696 = vpack.c.bf16 %v695, %v695
        %697 = vrot.lane.b32.xlu0 %v523, 88
        %v698 = vpop.permute.xlu0 %697
        %v700 = vsel %vm524, %v696, 0
        %v703 = vsel %vm589, %v698, 0
        %705 = vmatprep.subr.bf16.mxu0 0
        %706 = vmatpush1.bf16.msra.mxu0 %v703
        %707 = vmatprep.subr.bf16.mxu0 0
        %708 = vmatpush1.bf16.msra.mxu0 0
        %709 = vmatprep.subr.bf16.mxu0 0
        %710 = vmatpush1.bf16.msra.mxu0 0
        %711 = vmatprep.subr.bf16.mxu0 0
        %712 = vmatpush1.bf16.msra.mxu0 0
        %713 = vmatprep.subr.bf16.mxu0 0
        %714 = vmatpush1.bf16.msra.mxu0 0
        %715 = vmatprep.subr.bf16.mxu0 0
        %716 = vmatpush1.bf16.msra.mxu0 0
        %717 = vmatprep.subr.bf16.mxu0 0
        %718 = vmatpush1.bf16.msra.mxu0 0
        %719 = vmatprep.subr.bf16.mxu0 0
        %720 = vmatpush1.bf16.msra.mxu0 0
        %721 = vmatprep.subr.bf16.mxu0 0
        %722 = vmatpush1.bf16.msra.mxu0 0
        %723 = vmatprep.subr.bf16.mxu0 0
        %724 = vmatpush1.bf16.msra.mxu0 0
        %725 = vmatprep.subr.bf16.mxu0 0
        %726 = vmatpush1.bf16.msra.mxu0 0
        %727 = vmatprep.subr.bf16.mxu0 0
        %728 = vmatpush1.bf16.msra.mxu0 0
        %729 = vmatprep.subr.bf16.mxu0 0
        %730 = vmatpush1.bf16.msra.mxu0 0
        %731 = vmatprep.subr.bf16.mxu0 0
        %732 = vmatpush1.bf16.msra.mxu0 0
        %733 = vmatprep.subr.bf16.mxu0 0
        %734 = vmatpush1.bf16.msra.mxu0 0
        %735 = vmatprep.subr.bf16.mxu0 0
        %736 = vmatpush1.bf16.msra.mxu0 0
        %737 = vmatprep.mubr.bf16.mxu0 0
        %738 = vmatmul.mubr.bf16.gmra.mrb[0].mxu0 %v700
        %v739 = vpop.f32.mrb[0].mxu0
        %v740 = vadd.f32 0.0, %v739
        %v741 = vpop.f32.mrb[0].mxu0
        %v742 = vpop.f32.mrb[0].mxu0
        %v743 = vpop.f32.mrb[0].mxu0
        %744 = vdwg.mxu0
        %745 = vrot.lane.b32.xlu0 %v521, 112
        %v746 = vpop.permute.xlu0 %745
        %747 = vrot.lane.b32.xlu0 %v522, 112
        %v748 = vpop.permute.xlu0 %747
        %v750 = vsel %vm524, %v746, 0
        %v753 = vsel %vm524, %v748, 0
        %755 = vmatprep.subr.bf16.mxu0 0
        %756 = vmatpush1.bf16.xpose.msra.mxu0 %v753
        %757 = vmatprep.subr.bf16.mxu0 0
        %758 = vmatpush1.bf16.xpose.msra.mxu0 0
        %759 = vmatprep.subr.bf16.mxu0 0
        %760 = vmatpush1.bf16.xpose.msra.mxu0 0
        %761 = vmatprep.subr.bf16.mxu0 0
        %762 = vmatpush1.bf16.xpose.msra.mxu0 0
        %763 = vmatprep.subr.bf16.mxu0 0
        %764 = vmatpush1.bf16.xpose.msra.mxu0 0
        %765 = vmatprep.subr.bf16.mxu0 0
        %766 = vmatpush1.bf16.xpose.msra.mxu0 0
        %767 = vmatprep.subr.bf16.mxu0 0
        %768 = vmatpush1.bf16.xpose.msra.mxu0 0
        %769 = vmatprep.subr.bf16.mxu0 0
        %770 = vmatpush1.bf16.xpose.msra.mxu0 0
        %771 = vmatprep.subr.bf16.mxu0 0
        %772 = vmatpush1.bf16.xpose.msra.mxu0 0
        %773 = vmatprep.subr.bf16.mxu0 0
        %774 = vmatpush1.bf16.xpose.msra.mxu0 0
        %775 = vmatprep.subr.bf16.mxu0 0
        %776 = vmatpush1.bf16.xpose.msra.mxu0 0
        %777 = vmatprep.subr.bf16.mxu0 0
        %778 = vmatpush1.bf16.xpose.msra.mxu0 0
        %779 = vmatprep.subr.bf16.mxu0 0
        %780 = vmatpush1.bf16.xpose.msra.mxu0 0
        %781 = vmatprep.subr.bf16.mxu0 0
        %782 = vmatpush1.bf16.xpose.msra.mxu0 0
        %783 = vmatprep.subr.bf16.mxu0 0
        %784 = vmatpush1.bf16.xpose.msra.mxu0 0
        %785 = vmatprep.subr.bf16.mxu0 0
        %786 = vmatpush1.bf16.xpose.msra.mxu0 0
        %787 = vmatprep.mubr.bf16.mxu0 0
        %788 = vmatmul.mubr.bf16.gmra.mrb[0].mxu0 %v750
        %v789 = vpop.f32.mrb[0].mxu0
        %v790 = vadd.f32 0.0, %v789
        %v791 = vpop.f32.mrb[0].mxu0
        %v792 = vpop.f32.mrb[0].mxu0
        %v793 = vpop.f32.mrb[0].mxu0
        %794 = vdwg.mxu0
        %v795 = vsel %vm524, %v790, -inf
        %796 = vmax.xlane.f32.xlu0 %v795
        %v797 = vpop.xlane.xlu0 %796
        %v798 = vsub.f32 %v790, %v797
        %v799 = vmul.f32 %v798, 1.442695
        %v800 = vpow.pop %v799
        %v801 = vsel %vm524, %v800, 0.0
        %802 = vadd.xlane.f32.xlu0 %v801
        %v803 = vpop.xlane.xlu0 %802
        %v804 = vrcp.pop %v803
        %v805 = vmul.f32 %v800, %v804
        %v806 = vpack.c.bf16 %v805, %v805
        %807 = vrot.lane.b32.xlu0 %v523, 80
        %v808 = vpop.permute.xlu0 %807
        %v810 = vsel %vm524, %v806, 0
        %v813 = vsel %vm589, %v808, 0
        %815 = vmatprep.subr.bf16.mxu0 0
        %816 = vmatpush1.bf16.msra.mxu0 %v813
        %817 = vmatprep.subr.bf16.mxu0 0
        %818 = vmatpush1.bf16.msra.mxu0 0
        %819 = vmatprep.subr.bf16.mxu0 0
        %820 = vmatpush1.bf16.msra.mxu0 0
        %821 = vmatprep.subr.bf16.mxu0 0
        %822 = vmatpush1.bf16.msra.mxu0 0
        %823 = vmatprep.subr.bf16.mxu0 0
        %824 = vmatpush1.bf16.msra.mxu0 0
        %825 = vmatprep.subr.bf16.mxu0 0
        %826 = vmatpush1.bf16.msra.mxu0 0
        %827 = vmatprep.subr.bf16.mxu0 0
        %828 = vmatpush1.bf16.msra.mxu0 0
        %829 = vmatprep.subr.bf16.mxu0 0
        %830 = vmatpush1.bf16.msra.mxu0 0
        %831 = vmatprep.subr.bf16.mxu0 0
        %832 = vmatpush1.bf16.msra.mxu0 0
        %833 = vmatprep.subr.bf16.mxu0 0
        %834 = vmatpush1.bf16.msra.mxu0 0
        %835 = vmatprep.subr.bf16.mxu0 0
        %836 = vmatpush1.bf16.msra.mxu0 0
        %837 = vmatprep.subr.bf16.mxu0 0
        %838 = vmatpush1.bf16.msra.mxu0 0
        %839 = vmatprep.subr.bf16.mxu0 0
        %840 = vmatpush1.bf16.msra.mxu0 0
        %841 = vmatprep.subr.bf16.mxu0 0
        %842 = vmatpush1.bf16.msra.mxu0 0
        %843 = vmatprep.subr.bf16.mxu0 0
        %844 = vmatpush1.bf16.msra.mxu0 0
        %845 = vmatprep.subr.bf16.mxu0 0
        %846 = vmatpush1.bf16.msra.mxu0 0
        %847 = vmatprep.mubr.bf16.mxu0 0
        %848 = vmatmul.mubr.bf16.gmra.mrb[0].mxu0 %v810
        %v849 = vpop.f32.mrb[0].mxu0
        %v850 = vadd.f32 0.0, %v849
        %v851 = vpop.f32.mrb[0].mxu0
        %v852 = vpop.f32.mrb[0].mxu0
        %v853 = vpop.f32.mrb[0].mxu0
        %854 = vdwg.mxu0
        %855 = vrot.lane.b32.xlu0 %v521, 104
        %v856 = vpop.permute.xlu0 %855
        %857 = vrot.lane.b32.xlu0 %v522, 104
        %v858 = vpop.permute.xlu0 %857
        %v860 = vsel %vm524, %v856, 0
        %v863 = vsel %vm524, %v858, 0
        %865 = vmatprep.subr.bf16.mxu0 0
        %866 = vmatpush1.bf16.xpose.msra.mxu0 %v863
        %867 = vmatprep.subr.bf16.mxu0 0
        %868 = vmatpush1.bf16.xpose.msra.mxu0 0
        %869 = vmatprep.subr.bf16.mxu0 0
        %870 = vmatpush1.bf16.xpose.msra.mxu0 0
        %871 = vmatprep.subr.bf16.mxu0 0
        %872 = vmatpush1.bf16.xpose.msra.mxu0 0
        %873 = vmatprep.subr.bf16.mxu0 0
        %874 = vmatpush1.bf16.xpose.msra.mxu0 0
        %875 = vmatprep.subr.bf16.mxu0 0
        %876 = vmatpush1.bf16.xpose.msra.mxu0 0
        %877 = vmatprep.subr.bf16.mxu0 0
        %878 = vmatpush1.bf16.xpose.msra.mxu0 0
        %879 = vmatprep.subr.bf16.mxu0 0
        %880 = vmatpush1.bf16.xpose.msra.mxu0 0
        %881 = vmatprep.subr.bf16.mxu0 0
        %882 = vmatpush1.bf16.xpose.msra.mxu0 0
        %883 = vmatprep.subr.bf16.mxu0 0
        %884 = vmatpush1.bf16.xpose.msra.mxu0 0
        %885 = vmatprep.subr.bf16.mxu0 0
        %886 = vmatpush1.bf16.xpose.msra.mxu0 0
        %887 = vmatprep.subr.bf16.mxu0 0
        %888 = vmatpush1.bf16.xpose.msra.mxu0 0
        %889 = vmatprep.subr.bf16.mxu0 0
        %890 = vmatpush1.bf16.xpose.msra.mxu0 0
        %891 = vmatprep.subr.bf16.mxu0 0
        %892 = vmatpush1.bf16.xpose.msra.mxu0 0
        %893 = vmatprep.subr.bf16.mxu0 0
        %894 = vmatpush1.bf16.xpose.msra.mxu0 0
        %895 = vmatprep.subr.bf16.mxu0 0
        %896 = vmatpush1.bf16.xpose.msra.mxu0 0
        %897 = vmatprep.mubr.bf16.mxu0 0
        %898 = vmatmul.mubr.bf16.gmra.mrb[0].mxu0 %v860
        %v899 = vpop.f32.mrb[0].mxu0
        %v900 = vadd.f32 0.0, %v899
        %v901 = vpop.f32.mrb[0].mxu0
        %v902 = vpop.f32.mrb[0].mxu0
        %v903 = vpop.f32.mrb[0].mxu0
        %904 = vdwg.mxu0
        %v905 = vsel %vm524, %v900, -inf
        %906 = vmax.xlane.f32.xlu0 %v905
        %v907 = vpop.xlane.xlu0 %906
        %v908 = vsub.f32 %v900, %v907
        %v909 = vmul.f32 %v908, 1.442695
        %v910 = vpow.pop %v909
        %v911 = vsel %vm524, %v910, 0.0
        %912 = vadd.xlane.f32.xlu0 %v911
        %v913 = vpop.xlane.xlu0 %912
        %v914 = vrcp.pop %v913
        %v915 = vmul.f32 %v910, %v914
        %v916 = vpack.c.bf16 %v915, %v915
        %917 = vrot.lane.b32.xlu0 %v523, 72
        %v918 = vpop.permute.xlu0 %917
        %v920 = vsel %vm524, %v916, 0
        %v923 = vsel %vm589, %v918, 0
        %925 = vmatprep.subr.bf16.mxu0 0
        %926 = vmatpush1.bf16.msra.mxu0 %v923
        %927 = vmatprep.subr.bf16.mxu0 0
        %928 = vmatpush1.bf16.msra.mxu0 0
        %929 = vmatprep.subr.bf16.mxu0 0
        %930 = vmatpush1.bf16.msra.mxu0 0
        %931 = vmatprep.subr.bf16.mxu0 0
        %932 = vmatpush1.bf16.msra.mxu0 0
        %933 = vmatprep.subr.bf16.mxu0 0
        %934 = vmatpush1.bf16.msra.mxu0 0
        %935 = vmatprep.subr.bf16.mxu0 0
        %936 = vmatpush1.bf16.msra.mxu0 0
        %937 = vmatprep.subr.bf16.mxu0 0
        %938 = vmatpush1.bf16.msra.mxu0 0
        %939 = vmatprep.subr.bf16.mxu0 0
        %940 = vmatpush1.bf16.msra.mxu0 0
        %941 = vmatprep.subr.bf16.mxu0 0
        %942 = vmatpush1.bf16.msra.mxu0 0
        %943 = vmatprep.subr.bf16.mxu0 0
        %944 = vmatpush1.bf16.msra.mxu0 0
        %945 = vmatprep.subr.bf16.mxu0 0
        %946 = vmatpush1.bf16.msra.mxu0 0
        %947 = vmatprep.subr.bf16.mxu0 0
        %948 = vmatpush1.bf16.msra.mxu0 0
        %949 = vmatprep.subr.bf16.mxu0 0
        %950 = vmatpush1.bf16.msra.mxu0 0
        %951 = vmatprep.subr.bf16.mxu0 0
        %952 = vmatpush1.bf16.msra.mxu0 0
        %953 = vmatprep.subr.bf16.mxu0 0
        %954 = vmatpush1.bf16.msra.mxu0 0
        %955 = vmatprep.subr.bf16.mxu0 0
        %956 = vmatpush1.bf16.msra.mxu0 0
        %957 = vmatprep.mubr.bf16.mxu0 0
        %958 = vmatmul.mubr.bf16.gmra.mrb[0].mxu0 %v920
        %v959 = vpop.f32.mrb[0].mxu0
        %v960 = vadd.f32 0.0, %v959
        %v961 = vpop.f32.mrb[0].mxu0
        %v962 = vpop.f32.mrb[0].mxu0
        %v963 = vpop.f32.mrb[0].mxu0
        %964 = vdwg.mxu0
        %966 = vrot.lane.b32.xlu0 %v740, 8
        %v967 = vpop.permute.xlu0 %966
        %970 = vrot.lane.b32.xlu0 %v850, 16
        %v971 = vpop.permute.xlu0 %970
        %974 = vrot.lane.b32.xlu0 %v960, 24
        %v975 = vpop.permute.xlu0 %974
        %v977 = vsel %vm524, %v628, %v967
        %vm978 = vcmask 130048
        %v979 = vsel %vm978, %v977, %v971
        %vm980 = vcmask 195584
        %v981 = vsel %vm980, %v979, %v975
        %v982 = vpack.c.bf16 %v981, %v981
        %v983 = vlaneseq
        %v984 = vshrl.u32 %v983, 7
        %v985 = vsub.s32 5, %v984
        %v986 = vrot.slane %v448, %v985
        %v991 = vunpack.c.l.b16 %v439
        %v992 = vunpack.c.l.b16 %v440
        %v993 = vunpack.c.l.b16 %v441
        %v994 = vunpack.c.l.b16 %v442
        %v995 = vpack.c.b16 %v992, %v991
        %v996 = vpack.c.b16 %v994, %v993
        %v1000 = vsel %vm463, %v982, 0
        %1002 = vmatprep.subr.bf16.mxu0 0
        %1003 = vmatpush1.bf16.msra.mxu0 %v995
        %1004 = vmatprep.subr.bf16.mxu0 0
        %1005 = vmatpush1.bf16.msra.mxu0 %v996
        %1006 = vmatprep.subr.bf16.mxu0 0
        %1007 = vmatpush1.bf16.msra.mxu0 0
        %1008 = vmatprep.subr.bf16.mxu0 0
        %1009 = vmatpush1.bf16.msra.mxu0 0
        %1010 = vmatprep.subr.bf16.mxu0 0
        %1011 = vmatpush1.bf16.msra.mxu0 0
        %1012 = vmatprep.subr.bf16.mxu0 0
        %1013 = vmatpush1.bf16.msra.mxu0 0
        %1014 = vmatprep.subr.bf16.mxu0 0
        %1015 = vmatpush1.bf16.msra.mxu0 0
        %1016 = vmatprep.subr.bf16.mxu0 0
        %1017 = vmatpush1.bf16.msra.mxu0 0
        %1018 = vmatprep.subr.bf16.mxu0 0
        %1019 = vmatpush1.bf16.msra.mxu0 0
        %1020 = vmatprep.subr.bf16.mxu0 0
        %1021 = vmatpush1.bf16.msra.mxu0 0
        %1022 = vmatprep.subr.bf16.mxu0 0
        %1023 = vmatpush1.bf16.msra.mxu0 0
        %1024 = vmatprep.subr.bf16.mxu0 0
        %1025 = vmatpush1.bf16.msra.mxu0 0
        %1026 = vmatprep.subr.bf16.mxu0 0
        %1027 = vmatpush1.bf16.msra.mxu0 0
        %1028 = vmatprep.subr.bf16.mxu0 0
        %1029 = vmatpush1.bf16.msra.mxu0 0
        %1030 = vmatprep.subr.bf16.mxu0 0
        %1031 = vmatpush1.bf16.msra.mxu0 0
        %1032 = vmatprep.subr.bf16.mxu0 0
        %1033 = vmatpush1.bf16.msra.mxu0 0
        %1034 = vmatprep.mubr.bf16.mxu0 0
        %1035 = vmatmul.mubr.bf16.gmra.mrb[0].mxu0 %v1000
        %v1036 = vpop.f32.mrb[0].mxu0
        %v1037 = vadd.f32 %v986, %v1036
        %v1038 = vpop.f32.mrb[0].mxu0
        %v1039 = vpop.f32.mrb[0].mxu0
        %v1040 = vpop.f32.mrb[0].mxu0
        %1041 = vdwg.mxu0
        %v1042 = vadd.f32 %v415, %v1037
        %v1043 = vsel %vm463, %v1042, 0.0
        %1044 = vadd.xlane.f32.xlu0 %v1043
        %v1045 = vpop.xlane.xlu0 %1044
        %v1046 = vrcp.pop 32.0
        %v1047 = vmul.f32 %v1045, %v1046
        %v1048 = vsub.f32 %v1042, %v1047
        %v1049 = vmul.f32 %v1048, %v1048
        %v1050 = vsel %vm463, %v1049, 0.0
        %1051 = vadd.xlane.f32.xlu0 %v1050
        %v1052 = vpop.xlane.xlu0 %1051
        %v1053 = vmul.f32 %v1052, %v1046
        %v1054 = vadd.f32 %v1053, 1e-05
        %v1055 = vrsqrt.pop %v1054
        %v1056 = vmul.f32 %v1048, %v1055
        %v1057 = vlaneseq
        %v1058 = vshrl.u32 %v1057, 7
        %v1059 = vsub.s32 7, %v1058
        %v1060 = vrot.slane %v448, %v1059
        %v1061 = vmul.f32 %v1056, %v1060
        %v1062 = vlaneseq
        %v1063 = vshrl.u32 %v1062, 7
        %v1064 = vsub.s32 0, %v1063
        %v1065 = vrot.slane %v449, %v1064
        %v1066 = vadd.f32 %v1061, %v1065
        %v1067 = vpack.c.bf16 %v1066, %v1066
        %v1068 = vlaneseq
        %v1069 = vshrl.u32 %v1068, 7
        %v1070 = vsub.s32 2, %v1069
        %v1071 = vrot.slane %v448, %v1070
        %v1076 = vunpack.c.l.b16 %v424
        %v1077 = vunpack.c.l.b16 %v425
        %v1078 = vunpack.c.l.b16 %v426
        %v1079 = vunpack.c.l.b16 %v427
        %v1080 = vpack.c.b16 %v1077, %v1076
        %v1081 = vpack.c.b16 %v1079, %v1078
        %v1085 = vsel %vm463, %v1067, 0
        %1087 = vmatprep.subr.bf16.mxu0 0
        %1088 = vmatpush1.bf16.msra.mxu0 %v1080
        %1089 = vmatprep.subr.bf16.mxu0 0
        %1090 = vmatpush1.bf16.msra.mxu0 %v1081
        %1091 = vmatprep.subr.bf16.mxu0 0
        %1092 = vmatpush1.bf16.msra.mxu0 0
        %1093 = vmatprep.subr.bf16.mxu0 0
        %1094 = vmatpush1.bf16.msra.mxu0 0
        %1095 = vmatprep.subr.bf16.mxu0 0
        %1096 = vmatpush1.bf16.msra.mxu0 0
        %1097 = vmatprep.subr.bf16.mxu0 0
        %1098 = vmatpush1.bf16.msra.mxu0 0
        %1099 = vmatprep.subr.bf16.mxu0 0
        %1100 = vmatpush1.bf16.msra.mxu0 0
        %1101 = vmatprep.subr.bf16.mxu0 0
        %1102 = vmatpush1.bf16.msra.mxu0 0
        %1103 = vmatprep.subr.bf16.mxu0 0
        %1104 = vmatpush1.bf16.msra.mxu0 0
        %1105 = vmatprep.subr.bf16.mxu0 0
        %1106 = vmatpush1.bf16.msra.mxu0 0
        %1107 = vmatprep.subr.bf16.mxu0 0
        %1108 = vmatpush1.bf16.msra.mxu0 0
        %1109 = vmatprep.subr.bf16.mxu0 0
        %1110 = vmatpush1.bf16.msra.mxu0 0
        %1111 = vmatprep.subr.bf16.mxu0 0
        %1112 = vmatpush1.bf16.msra.mxu0 0
        %1113 = vmatprep.subr.bf16.mxu0 0
        %1114 = vmatpush1.bf16.msra.mxu0 0
        %1115 = vmatprep.subr.bf16.mxu0 0
        %1116 = vmatpush1.bf16.msra.mxu0 0
        %1117 = vmatprep.subr.bf16.mxu0 0
        %1118 = vmatpush1.bf16.msra.mxu0 0
        %1119 = vmatprep.mubr.bf16.mxu0 0
        %1120 = vmatmul.mubr.bf16.gmra.mrb[0].mxu0 %v1085
        %v1121 = vpop.f32.mrb[0].mxu0
        %v1122 = vadd.f32 %v1071, %v1121
        %v1123 = vpop.f32.mrb[0].mxu0
        %v1124 = vpop.f32.mrb[0].mxu0
        %v1125 = vpop.f32.mrb[0].mxu0
        %1126 = vdwg.mxu0
        %v1127 = vpack.c.bf16 %v419, %v418
        %v1128 = vlaneseq
        %v1129 = vshrl.u32 %v1128, 7
        %v1130 = vsub.s32 3, %v1129
        %v1131 = vrot.slane %v448, %v1130
        %v1136 = vunpack.c.l.b16 %v429
        %v1137 = vunpack.c.l.b16 %v430
        %v1138 = vunpack.c.l.b16 %v431
        %v1139 = vunpack.c.l.b16 %v432
        %v1140 = vpack.c.b16 %v1137, %v1136
        %v1141 = vpack.c.b16 %v1139, %v1138
        %v1145 = vsel %vm463, %v1127, 0
        %1147 = vmatprep.subr.bf16.mxu0 0
        %1148 = vmatpush1.bf16.msra.mxu0 %v1140
        %1149 = vmatprep.subr.bf16.mxu0 0
        %1150 = vmatpush1.bf16.msra.mxu0 %v1141
        %1151 = vmatprep.subr.bf16.mxu0 0
        %1152 = vmatpush1.bf16.msra.mxu0 0
        %1153 = vmatprep.subr.bf16.mxu0 0
        %1154 = vmatpush1.bf16.msra.mxu0 0
        %1155 = vmatprep.subr.bf16.mxu0 0
        %1156 = vmatpush1.bf16.msra.mxu0 0
        %1157 = vmatprep.subr.bf16.mxu0 0
        %1158 = vmatpush1.bf16.msra.mxu0 0
        %1159 = vmatprep.subr.bf16.mxu0 0
        %1160 = vmatpush1.bf16.msra.mxu0 0
        %1161 = vmatprep.subr.bf16.mxu0 0
        %1162 = vmatpush1.bf16.msra.mxu0 0
        %1163 = vmatprep.subr.bf16.mxu0 0
        %1164 = vmatpush1.bf16.msra.mxu0 0
        %1165 = vmatprep.subr.bf16.mxu0 0
        %1166 = vmatpush1.bf16.msra.mxu0 0
        %1167 = vmatprep.subr.bf16.mxu0 0
        %1168 = vmatpush1.bf16.msra.mxu0 0
        %1169 = vmatprep.subr.bf16.mxu0 0
        %1170 = vmatpush1.bf16.msra.mxu0 0
        %1171 = vmatprep.subr.bf16.mxu0 0
        %1172 = vmatpush1.bf16.msra.mxu0 0
        %1173 = vmatprep.subr.bf16.mxu0 0
        %1174 = vmatpush1.bf16.msra.mxu0 0
        %1175 = vmatprep.subr.bf16.mxu0 0
        %1176 = vmatpush1.bf16.msra.mxu0 0
        %1177 = vmatprep.subr.bf16.mxu0 0
        %1178 = vmatpush1.bf16.msra.mxu0 0
        %1179 = vmatprep.mubr.bf16.mxu0 0
        %1180 = vmatmul.mubr.bf16.gmra.mrb[0].mxu0 %v1145
        %v1181 = vpop.f32.mrb[0].mxu0
        %v1182 = vadd.f32 %v1131, %v1181
        %v1183 = vpop.f32.mrb[0].mxu0
        %v1184 = vpop.f32.mrb[0].mxu0
        %v1185 = vadd.f32 %v1131, %v1184
        %v1186 = vpop.f32.mrb[0].mxu0
        %1187 = vdwg.mxu0
        %v1188 = vpack.c.bf16 %v417, %v416
        %v1189 = vlaneseq
        %v1190 = vshrl.u32 %v1189, 7
        %v1191 = vsub.s32 4, %v1190
        %v1192 = vrot.slane %v448, %v1191
        %v1197 = vunpack.c.l.b16 %v434
        %v1198 = vunpack.c.l.b16 %v435
        %v1199 = vunpack.c.l.b16 %v436
        %v1200 = vunpack.c.l.b16 %v437
        %v1201 = vpack.c.b16 %v1198, %v1197
        %v1202 = vpack.c.b16 %v1200, %v1199
        %v1206 = vsel %vm463, %v1188, 0
        %1208 = vmatprep.subr.bf16.mxu0 0
        %1209 = vmatpush1.bf16.msra.mxu0 %v1201
        %1210 = vmatprep.subr.bf16.mxu0 0
        %1211 = vmatpush1.bf16.msra.mxu0 %v1202
        %1212 = vmatprep.subr.bf16.mxu0 0
        %1213 = vmatpush1.bf16.msra.mxu0 0
        %1214 = vmatprep.subr.bf16.mxu0 0
        %1215 = vmatpush1.bf16.msra.mxu0 0
        %1216 = vmatprep.subr.bf16.mxu0 0
        %1217 = vmatpush1.bf16.msra.mxu0 0
        %1218 = vmatprep.subr.bf16.mxu0 0
        %1219 = vmatpush1.bf16.msra.mxu0 0
        %1220 = vmatprep.subr.bf16.mxu0 0
        %1221 = vmatpush1.bf16.msra.mxu0 0
        %1222 = vmatprep.subr.bf16.mxu0 0
        %1223 = vmatpush1.bf16.msra.mxu0 0
        %1224 = vmatprep.subr.bf16.mxu0 0
        %1225 = vmatpush1.bf16.msra.mxu0 0
        %1226 = vmatprep.subr.bf16.mxu0 0
        %1227 = vmatpush1.bf16.msra.mxu0 0
        %1228 = vmatprep.subr.bf16.mxu0 0
        %1229 = vmatpush1.bf16.msra.mxu0 0
        %1230 = vmatprep.subr.bf16.mxu0 0
        %1231 = vmatpush1.bf16.msra.mxu0 0
        %1232 = vmatprep.subr.bf16.mxu0 0
        %1233 = vmatpush1.bf16.msra.mxu0 0
        %1234 = vmatprep.subr.bf16.mxu0 0
        %1235 = vmatpush1.bf16.msra.mxu0 0
        %1236 = vmatprep.subr.bf16.mxu0 0
        %1237 = vmatpush1.bf16.msra.mxu0 0
        %1238 = vmatprep.subr.bf16.mxu0 0
        %1239 = vmatpush1.bf16.msra.mxu0 0
        %1240 = vmatprep.mubr.bf16.mxu0 0
        %1241 = vmatmul.mubr.bf16.gmra.mrb[0].mxu0 %v1206
        %v1242 = vpop.f32.mrb[0].mxu0
        %v1243 = vadd.f32 %v1192, %v1242
        %v1244 = vpop.f32.mrb[0].mxu0
        %v1245 = vpop.f32.mrb[0].mxu0
        %v1246 = vadd.f32 %v1192, %v1245
        %v1247 = vpop.f32.mrb[0].mxu0
        %1248 = vdwg.mxu0
        %v1249 = vpack.c.bf16 %v1122, %v1122
        %v1250 = vpack.c.bf16 %v1185, %v1182
        %v1251 = vpack.c.bf16 %v1246, %v1243
        %v1253 = vsel %vm524, %v1249, 0
        %v1256 = vsel %vm524, %v1250, 0
        %1258 = vmatprep.subr.bf16.mxu0 0
        %1259 = vmatpush1.bf16.xpose.msra.mxu0 %v1256
        %1260 = vmatprep.subr.bf16.mxu0 0
        %1261 = vmatpush1.bf16.xpose.msra.mxu0 0
        %1262 = vmatprep.subr.bf16.mxu0 0
        %1263 = vmatpush1.bf16.xpose.msra.mxu0 0
        %1264 = vmatprep.subr.bf16.mxu0 0
        %1265 = vmatpush1.bf16.xpose.msra.mxu0 0
        %1266 = vmatprep.subr.bf16.mxu0 0
        %1267 = vmatpush1.bf16.xpose.msra.mxu0 0
        %1268 = vmatprep.subr.bf16.mxu0 0
        %1269 = vmatpush1.bf16.xpose.msra.mxu0 0
        %1270 = vmatprep.subr.bf16.mxu0 0
        %1271 = vmatpush1.bf16.xpose.msra.mxu0 0
        %1272 = vmatprep.subr.bf16.mxu0 0
        %1273 = vmatpush1.bf16.xpose.msra.mxu0 0
        %1274 = vmatprep.subr.bf16.mxu0 0
        %1275 = vmatpush1.bf16.xpose.msra.mxu0 0
        %1276 = vmatprep.subr.bf16.mxu0 0
        %1277 = vmatpush1.bf16.xpose.msra.mxu0 0
        %1278 = vmatprep.subr.bf16.mxu0 0
        %1279 = vmatpush1.bf16.xpose.msra.mxu0 0
        %1280 = vmatprep.subr.bf16.mxu0 0
        %1281 = vmatpush1.bf16.xpose.msra.mxu0 0
        %1282 = vmatprep.subr.bf16.mxu0 0
        %1283 = vmatpush1.bf16.xpose.msra.mxu0 0
        %1284 = vmatprep.subr.bf16.mxu0 0
        %1285 = vmatpush1.bf16.xpose.msra.mxu0 0
        %1286 = vmatprep.subr.bf16.mxu0 0
        %1287 = vmatpush1.bf16.xpose.msra.mxu0 0
        %1288 = vmatprep.subr.bf16.mxu0 0
        %1289 = vmatpush1.bf16.xpose.msra.mxu0 0
        %1290 = vmatprep.mubr.bf16.mxu0 0
        %1291 = vmatmul.mubr.bf16.gmra.mrb[0].mxu0 %v1253
        %v1292 = vpop.f32.mrb[0].mxu0
        %v1293 = vadd.f32 0.0, %v1292
        %v1294 = vpop.f32.mrb[0].mxu0
        %v1295 = vpop.f32.mrb[0].mxu0
        %v1296 = vpop.f32.mrb[0].mxu0
        %1297 = vdwg.mxu0
        %v1298 = vsel %vm978, %v1293, -inf
        %1299 = vmax.xlane.f32.xlu0 %v1298
        %v1300 = vpop.xlane.xlu0 %1299
        %v1301 = vsub.f32 %v1293, %v1300
        %v1302 = vmul.f32 %v1301, 1.442695
        %v1303 = vpow.pop %v1302
        %v1304 = vsel %vm978, %v1303, 0.0
        %1305 = vadd.xlane.f32.xlu0 %v1304
        %v1306 = vpop.xlane.xlu0 %1305
        %v1307 = vrcp.pop %v1306
        %v1308 = vmul.f32 %v1303, %v1307
        %v1309 = vpack.c.bf16 %v1308, %v1308
        %v1311 = vsel %vm978, %v1309, 0
        %1313 = vmatprep.subr.bf16.mxu0 0
        %1314 = vmatpush1.bf16.msra.mxu0 %v1251
        %1315 = vmatprep.subr.bf16.mxu0 0
        %1316 = vmatpush1.bf16.msra.mxu0 0
        %1317 = vmatprep.subr.bf16.mxu0 0
        %1318 = vmatpush1.bf16.msra.mxu0 0
        %1319 = vmatprep.subr.bf16.mxu0 0
        %1320 = vmatpush1.bf16.msra.mxu0 0
        %1321 = vmatprep.subr.bf16.mxu0 0
        %1322 = vmatpush1.bf16.msra.mxu0 0
        %1323 = vmatprep.subr.bf16.mxu0 0
        %1324 = vmatpush1.bf16.msra.mxu0 0
        %1325 = vmatprep.subr.bf16.mxu0 0
        %1326 = vmatpush1.bf16.msra.mxu0 0
        %1327 = vmatprep.subr.bf16.mxu0 0
        %1328 = vmatpush1.bf16.msra.mxu0 0
        %1329 = vmatprep.subr.bf16.mxu0 0
        %1330 = vmatpush1.bf16.msra.mxu0 0
        %1331 = vmatprep.subr.bf16.mxu0 0
        %1332 = vmatpush1.bf16.msra.mxu0 0
        %1333 = vmatprep.subr.bf16.mxu0 0
        %1334 = vmatpush1.bf16.msra.mxu0 0
        %1335 = vmatprep.subr.bf16.mxu0 0
        %1336 = vmatpush1.bf16.msra.mxu0 0
        %1337 = vmatprep.subr.bf16.mxu0 0
        %1338 = vmatpush1.bf16.msra.mxu0 0
        %1339 = vmatprep.subr.bf16.mxu0 0
        %1340 = vmatpush1.bf16.msra.mxu0 0
        %1341 = vmatprep.subr.bf16.mxu0 0
        %1342 = vmatpush1.bf16.msra.mxu0 0
        %1343 = vmatprep.subr.bf16.mxu0 0
        %1344 = vmatpush1.bf16.msra.mxu0 0
        %1345 = vmatprep.mubr.bf16.mxu0 0
        %1346 = vmatmul.mubr.bf16.gmra.mrb[0].mxu0 %v1311
        %v1347 = vpop.f32.mrb[0].mxu0
        %v1348 = vadd.f32 0.0, %v1347
        %v1349 = vpop.f32.mrb[0].mxu0
        %v1350 = vpop.f32.mrb[0].mxu0
        %v1351 = vpop.f32.mrb[0].mxu0
        %1352 = vdwg.mxu0
        %1354 = vrot.lane.b32.xlu0 %v1249, 120
        %v1355 = vpop.permute.xlu0 %1354
        %1357 = vrot.lane.b32.xlu0 %v1250, 120
        %v1358 = vpop.permute.xlu0 %1357
        %v1360 = vsel %vm524, %v1355, 0
        %v1363 = vsel %vm524, %v1358, 0
        %1365 = vmatprep.subr.bf16.mxu0 0
        %1366 = vmatpush1.bf16.xpose.msra.mxu0 %v1363
        %1367 = vmatprep.subr.bf16.mxu0 0
        %1368 = vmatpush1.bf16.xpose.msra.mxu0 0
        %1369 = vmatprep.subr.bf16.mxu0 0
        %1370 = vmatpush1.bf16.xpose.msra.mxu0 0
        %1371 = vmatprep.subr.bf16.mxu0 0
        %1372 = vmatpush1.bf16.xpose.msra.mxu0 0
        %1373 = vmatprep.subr.bf16.mxu0 0
        %1374 = vmatpush1.bf16.xpose.msra.mxu0 0
        %1375 = vmatprep.subr.bf16.mxu0 0
        %1376 = vmatpush1.bf16.xpose.msra.mxu0 0
        %1377 = vmatprep.subr.bf16.mxu0 0
        %1378 = vmatpush1.bf16.xpose.msra.mxu0 0
        %1379 = vmatprep.subr.bf16.mxu0 0
        %1380 = vmatpush1.bf16.xpose.msra.mxu0 0
        %1381 = vmatprep.subr.bf16.mxu0 0
        %1382 = vmatpush1.bf16.xpose.msra.mxu0 0
        %1383 = vmatprep.subr.bf16.mxu0 0
        %1384 = vmatpush1.bf16.xpose.msra.mxu0 0
        %1385 = vmatprep.subr.bf16.mxu0 0
        %1386 = vmatpush1.bf16.xpose.msra.mxu0 0
        %1387 = vmatprep.subr.bf16.mxu0 0
        %1388 = vmatpush1.bf16.xpose.msra.mxu0 0
        %1389 = vmatprep.subr.bf16.mxu0 0
        %1390 = vmatpush1.bf16.xpose.msra.mxu0 0
        %1391 = vmatprep.subr.bf16.mxu0 0
        %1392 = vmatpush1.bf16.xpose.msra.mxu0 0
        %1393 = vmatprep.subr.bf16.mxu0 0
        %1394 = vmatpush1.bf16.xpose.msra.mxu0 0
        %1395 = vmatprep.subr.bf16.mxu0 0
        %1396 = vmatpush1.bf16.xpose.msra.mxu0 0
        %1397 = vmatprep.mubr.bf16.mxu0 0
        %1398 = vmatmul.mubr.bf16.gmra.mrb[0].mxu0 %v1360
        %v1399 = vpop.f32.mrb[0].mxu0
        %v1400 = vadd.f32 0.0, %v1399
        %v1401 = vpop.f32.mrb[0].mxu0
        %v1402 = vpop.f32.mrb[0].mxu0
        %v1403 = vpop.f32.mrb[0].mxu0
        %1404 = vdwg.mxu0
        %v1405 = vsel %vm978, %v1400, -inf
        %1406 = vmax.xlane.f32.xlu0 %v1405
        %v1407 = vpop.xlane.xlu0 %1406
        %v1408 = vsub.f32 %v1400, %v1407
        %v1409 = vmul.f32 %v1408, 1.442695
        %v1410 = vpow.pop %v1409
        %v1411 = vsel %vm978, %v1410, 0.0
        %1412 = vadd.xlane.f32.xlu0 %v1411
        %v1413 = vpop.xlane.xlu0 %1412
        %v1414 = vrcp.pop %v1413
        %v1415 = vmul.f32 %v1410, %v1414
        %v1416 = vpack.c.bf16 %v1415, %v1415
        %1418 = vrot.lane.b32.xlu0 %v1251, 120
        %v1419 = vpop.permute.xlu0 %1418
        %v1422 = vsel %vm978, %v1416, 0
        %1424 = vmatprep.subr.bf16.mxu0 0
        %1425 = vmatpush1.bf16.msra.mxu0 %v1419
        %1426 = vmatprep.subr.bf16.mxu0 0
        %1427 = vmatpush1.bf16.msra.mxu0 0
        %1428 = vmatprep.subr.bf16.mxu0 0
        %1429 = vmatpush1.bf16.msra.mxu0 0
        %1430 = vmatprep.subr.bf16.mxu0 0
        %1431 = vmatpush1.bf16.msra.mxu0 0
        %1432 = vmatprep.subr.bf16.mxu0 0
        %1433 = vmatpush1.bf16.msra.mxu0 0
        %1434 = vmatprep.subr.bf16.mxu0 0
        %1435 = vmatpush1.bf16.msra.mxu0 0
        %1436 = vmatprep.subr.bf16.mxu0 0
        %1437 = vmatpush1.bf16.msra.mxu0 0
        %1438 = vmatprep.subr.bf16.mxu0 0
        %1439 = vmatpush1.bf16.msra.mxu0 0
        %1440 = vmatprep.subr.bf16.mxu0 0
        %1441 = vmatpush1.bf16.msra.mxu0 0
        %1442 = vmatprep.subr.bf16.mxu0 0
        %1443 = vmatpush1.bf16.msra.mxu0 0
        %1444 = vmatprep.subr.bf16.mxu0 0
        %1445 = vmatpush1.bf16.msra.mxu0 0
        %1446 = vmatprep.subr.bf16.mxu0 0
        %1447 = vmatpush1.bf16.msra.mxu0 0
        %1448 = vmatprep.subr.bf16.mxu0 0
        %1449 = vmatpush1.bf16.msra.mxu0 0
        %1450 = vmatprep.subr.bf16.mxu0 0
        %1451 = vmatpush1.bf16.msra.mxu0 0
        %1452 = vmatprep.subr.bf16.mxu0 0
        %1453 = vmatpush1.bf16.msra.mxu0 0
        %1454 = vmatprep.subr.bf16.mxu0 0
        %1455 = vmatpush1.bf16.msra.mxu0 0
        %1456 = vmatprep.mubr.bf16.mxu0 0
        %1457 = vmatmul.mubr.bf16.gmra.mrb[0].mxu0 %v1422
        %v1458 = vpop.f32.mrb[0].mxu0
        %v1459 = vadd.f32 0.0, %v1458
        %v1460 = vpop.f32.mrb[0].mxu0
        %v1461 = vpop.f32.mrb[0].mxu0
        %v1462 = vpop.f32.mrb[0].mxu0
        %1463 = vdwg.mxu0
        %1464 = vrot.lane.b32.xlu0 %v1249, 112
        %v1465 = vpop.permute.xlu0 %1464
        %1466 = vrot.lane.b32.xlu0 %v1250, 112
        %v1467 = vpop.permute.xlu0 %1466
        %v1469 = vsel %vm524, %v1465, 0
        %v1472 = vsel %vm524, %v1467, 0
        %1474 = vmatprep.subr.bf16.mxu0 0
        %1475 = vmatpush1.bf16.xpose.msra.mxu0 %v1472
        %1476 = vmatprep.subr.bf16.mxu0 0
        %1477 = vmatpush1.bf16.xpose.msra.mxu0 0
        %1478 = vmatprep.subr.bf16.mxu0 0
        %1479 = vmatpush1.bf16.xpose.msra.mxu0 0
        %1480 = vmatprep.subr.bf16.mxu0 0
        %1481 = vmatpush1.bf16.xpose.msra.mxu0 0
        %1482 = vmatprep.subr.bf16.mxu0 0
        %1483 = vmatpush1.bf16.xpose.msra.mxu0 0
        %1484 = vmatprep.subr.bf16.mxu0 0
        %1485 = vmatpush1.bf16.xpose.msra.mxu0 0
        %1486 = vmatprep.subr.bf16.mxu0 0
        %1487 = vmatpush1.bf16.xpose.msra.mxu0 0
        %1488 = vmatprep.subr.bf16.mxu0 0
        %1489 = vmatpush1.bf16.xpose.msra.mxu0 0
        %1490 = vmatprep.subr.bf16.mxu0 0
        %1491 = vmatpush1.bf16.xpose.msra.mxu0 0
        %1492 = vmatprep.subr.bf16.mxu0 0
        %1493 = vmatpush1.bf16.xpose.msra.mxu0 0
        %1494 = vmatprep.subr.bf16.mxu0 0
        %1495 = vmatpush1.bf16.xpose.msra.mxu0 0
        %1496 = vmatprep.subr.bf16.mxu0 0
        %1497 = vmatpush1.bf16.xpose.msra.mxu0 0
        %1498 = vmatprep.subr.bf16.mxu0 0
        %1499 = vmatpush1.bf16.xpose.msra.mxu0 0
        %1500 = vmatprep.subr.bf16.mxu0 0
        %1501 = vmatpush1.bf16.xpose.msra.mxu0 0
        %1502 = vmatprep.subr.bf16.mxu0 0
        %1503 = vmatpush1.bf16.xpose.msra.mxu0 0
        %1504 = vmatprep.subr.bf16.mxu0 0
        %1505 = vmatpush1.bf16.xpose.msra.mxu0 0
        %1506 = vmatprep.mubr.bf16.mxu0 0
        %1507 = vmatmul.mubr.bf16.gmra.mrb[0].mxu0 %v1469
        %v1508 = vpop.f32.mrb[0].mxu0
        %v1509 = vadd.f32 0.0, %v1508
        %v1510 = vpop.f32.mrb[0].mxu0
        %v1511 = vpop.f32.mrb[0].mxu0
        %v1512 = vpop.f32.mrb[0].mxu0
        %1513 = vdwg.mxu0
        %v1514 = vsel %vm978, %v1509, -inf
        %1515 = vmax.xlane.f32.xlu0 %v1514
        %v1516 = vpop.xlane.xlu0 %1515
        %v1517 = vsub.f32 %v1509, %v1516
        %v1518 = vmul.f32 %v1517, 1.442695
        %v1519 = vpow.pop %v1518
        %v1520 = vsel %vm978, %v1519, 0.0
        %1521 = vadd.xlane.f32.xlu0 %v1520
        %v1522 = vpop.xlane.xlu0 %1521
        %v1523 = vrcp.pop %v1522
        %v1524 = vmul.f32 %v1519, %v1523
        %v1525 = vpack.c.bf16 %v1524, %v1524
        %1526 = vrot.lane.b32.xlu0 %v1251, 112
        %v1527 = vpop.permute.xlu0 %1526
        %v1530 = vsel %vm978, %v1525, 0
        %1532 = vmatprep.subr.bf16.mxu0 0
        %1533 = vmatpush1.bf16.msra.mxu0 %v1527
        %1534 = vmatprep.subr.bf16.mxu0 0
        %1535 = vmatpush1.bf16.msra.mxu0 0
        %1536 = vmatprep.subr.bf16.mxu0 0
        %1537 = vmatpush1.bf16.msra.mxu0 0
        %1538 = vmatprep.subr.bf16.mxu0 0
        %1539 = vmatpush1.bf16.msra.mxu0 0
        %1540 = vmatprep.subr.bf16.mxu0 0
        %1541 = vmatpush1.bf16.msra.mxu0 0
        %1542 = vmatprep.subr.bf16.mxu0 0
        %1543 = vmatpush1.bf16.msra.mxu0 0
        %1544 = vmatprep.subr.bf16.mxu0 0
        %1545 = vmatpush1.bf16.msra.mxu0 0
        %1546 = vmatprep.subr.bf16.mxu0 0
        %1547 = vmatpush1.bf16.msra.mxu0 0
        %1548 = vmatprep.subr.bf16.mxu0 0
        %1549 = vmatpush1.bf16.msra.mxu0 0
        %1550 = vmatprep.subr.bf16.mxu0 0
        %1551 = vmatpush1.bf16.msra.mxu0 0
        %1552 = vmatprep.subr.bf16.mxu0 0
        %1553 = vmatpush1.bf16.msra.mxu0 0
        %1554 = vmatprep.subr.bf16.mxu0 0
        %1555 = vmatpush1.bf16.msra.mxu0 0
        %1556 = vmatprep.subr.bf16.mxu0 0
        %1557 = vmatpush1.bf16.msra.mxu0 0
        %1558 = vmatprep.subr.bf16.mxu0 0
        %1559 = vmatpush1.bf16.msra.mxu0 0
        %1560 = vmatprep.subr.bf16.mxu0 0
        %1561 = vmatpush1.bf16.msra.mxu0 0
        %1562 = vmatprep.subr.bf16.mxu0 0
        %1563 = vmatpush1.bf16.msra.mxu0 0
        %1564 = vmatprep.mubr.bf16.mxu0 0
        %1565 = vmatmul.mubr.bf16.gmra.mrb[0].mxu0 %v1530
        %v1566 = vpop.f32.mrb[0].mxu0
        %v1567 = vadd.f32 0.0, %v1566
        %v1568 = vpop.f32.mrb[0].mxu0
        %v1569 = vpop.f32.mrb[0].mxu0
        %v1570 = vpop.f32.mrb[0].mxu0
        %1571 = vdwg.mxu0
        %1572 = vrot.lane.b32.xlu0 %v1249, 104
        %v1573 = vpop.permute.xlu0 %1572
        %1574 = vrot.lane.b32.xlu0 %v1250, 104
        %v1575 = vpop.permute.xlu0 %1574
        %v1577 = vsel %vm524, %v1573, 0
        %v1580 = vsel %vm524, %v1575, 0
        %1582 = vmatprep.subr.bf16.mxu0 0
        %1583 = vmatpush1.bf16.xpose.msra.mxu0 %v1580
        %1584 = vmatprep.subr.bf16.mxu0 0
        %1585 = vmatpush1.bf16.xpose.msra.mxu0 0
        %1586 = vmatprep.subr.bf16.mxu0 0
        %1587 = vmatpush1.bf16.xpose.msra.mxu0 0
        %1588 = vmatprep.subr.bf16.mxu0 0
        %1589 = vmatpush1.bf16.xpose.msra.mxu0 0
        %1590 = vmatprep.subr.bf16.mxu0 0
        %1591 = vmatpush1.bf16.xpose.msra.mxu0 0
        %1592 = vmatprep.subr.bf16.mxu0 0
        %1593 = vmatpush1.bf16.xpose.msra.mxu0 0
        %1594 = vmatprep.subr.bf16.mxu0 0
        %1595 = vmatpush1.bf16.xpose.msra.mxu0 0
        %1596 = vmatprep.subr.bf16.mxu0 0
        %1597 = vmatpush1.bf16.xpose.msra.mxu0 0
        %1598 = vmatprep.subr.bf16.mxu0 0
        %1599 = vmatpush1.bf16.xpose.msra.mxu0 0
        %1600 = vmatprep.subr.bf16.mxu0 0
        %1601 = vmatpush1.bf16.xpose.msra.mxu0 0
        %1602 = vmatprep.subr.bf16.mxu0 0
        %1603 = vmatpush1.bf16.xpose.msra.mxu0 0
        %1604 = vmatprep.subr.bf16.mxu0 0
        %1605 = vmatpush1.bf16.xpose.msra.mxu0 0
        %1606 = vmatprep.subr.bf16.mxu0 0
        %1607 = vmatpush1.bf16.xpose.msra.mxu0 0
        %1608 = vmatprep.subr.bf16.mxu0 0
        %1609 = vmatpush1.bf16.xpose.msra.mxu0 0
        %1610 = vmatprep.subr.bf16.mxu0 0
        %1611 = vmatpush1.bf16.xpose.msra.mxu0 0
        %1612 = vmatprep.subr.bf16.mxu0 0
        %1613 = vmatpush1.bf16.xpose.msra.mxu0 0
        %1614 = vmatprep.mubr.bf16.mxu0 0
        %1615 = vmatmul.mubr.bf16.gmra.mrb[0].mxu0 %v1577
        %v1616 = vpop.f32.mrb[0].mxu0
        %v1617 = vadd.f32 0.0, %v1616
        %v1618 = vpop.f32.mrb[0].mxu0
        %v1619 = vpop.f32.mrb[0].mxu0
        %v1620 = vpop.f32.mrb[0].mxu0
        %1621 = vdwg.mxu0
        %v1622 = vsel %vm978, %v1617, -inf
        %1623 = vmax.xlane.f32.xlu0 %v1622
        %v1624 = vpop.xlane.xlu0 %1623
        %v1625 = vsub.f32 %v1617, %v1624
        %v1626 = vmul.f32 %v1625, 1.442695
        %v1627 = vpow.pop %v1626
        %v1628 = vsel %vm978, %v1627, 0.0
        %1629 = vadd.xlane.f32.xlu0 %v1628
        %v1630 = vpop.xlane.xlu0 %1629
        %v1631 = vrcp.pop %v1630
        %v1632 = vmul.f32 %v1627, %v1631
        %v1633 = vpack.c.bf16 %v1632, %v1632
        %1634 = vrot.lane.b32.xlu0 %v1251, 104
        %v1635 = vpop.permute.xlu0 %1634
        %v1638 = vsel %vm978, %v1633, 0
        %1640 = vmatprep.subr.bf16.mxu0 0
        %1641 = vmatpush1.bf16.msra.mxu0 %v1635
        %1642 = vmatprep.subr.bf16.mxu0 0
        %1643 = vmatpush1.bf16.msra.mxu0 0
        %1644 = vmatprep.subr.bf16.mxu0 0
        %1645 = vmatpush1.bf16.msra.mxu0 0
        %1646 = vmatprep.subr.bf16.mxu0 0
        %1647 = vmatpush1.bf16.msra.mxu0 0
        %1648 = vmatprep.subr.bf16.mxu0 0
        %1649 = vmatpush1.bf16.msra.mxu0 0
        %1650 = vmatprep.subr.bf16.mxu0 0
        %1651 = vmatpush1.bf16.msra.mxu0 0
        %1652 = vmatprep.subr.bf16.mxu0 0
        %1653 = vmatpush1.bf16.msra.mxu0 0
        %1654 = vmatprep.subr.bf16.mxu0 0
        %1655 = vmatpush1.bf16.msra.mxu0 0
        %1656 = vmatprep.subr.bf16.mxu0 0
        %1657 = vmatpush1.bf16.msra.mxu0 0
        %1658 = vmatprep.subr.bf16.mxu0 0
        %1659 = vmatpush1.bf16.msra.mxu0 0
        %1660 = vmatprep.subr.bf16.mxu0 0
        %1661 = vmatpush1.bf16.msra.mxu0 0
        %1662 = vmatprep.subr.bf16.mxu0 0
        %1663 = vmatpush1.bf16.msra.mxu0 0
        %1664 = vmatprep.subr.bf16.mxu0 0
        %1665 = vmatpush1.bf16.msra.mxu0 0
        %1666 = vmatprep.subr.bf16.mxu0 0
        %1667 = vmatpush1.bf16.msra.mxu0 0
        %1668 = vmatprep.subr.bf16.mxu0 0
        %1669 = vmatpush1.bf16.msra.mxu0 0
        %1670 = vmatprep.subr.bf16.mxu0 0
        %1671 = vmatpush1.bf16.msra.mxu0 0
        %1672 = vmatprep.mubr.bf16.mxu0 0
        %1673 = vmatmul.mubr.bf16.gmra.mrb[0].mxu0 %v1638
        %v1674 = vpop.f32.mrb[0].mxu0
        %v1675 = vadd.f32 0.0, %v1674
        %v1676 = vpop.f32.mrb[0].mxu0
        %v1677 = vpop.f32.mrb[0].mxu0
        %v1678 = vpop.f32.mrb[0].mxu0
        %1679 = vdwg.mxu0
        %1681 = vrot.lane.b32.xlu0 %v1459, 8
        %v1682 = vpop.permute.xlu0 %1681
        %1685 = vrot.lane.b32.xlu0 %v1567, 16
        %v1686 = vpop.permute.xlu0 %1685
        %1689 = vrot.lane.b32.xlu0 %v1675, 24
        %v1690 = vpop.permute.xlu0 %1689
        %v1692 = vsel %vm524, %v1348, %v1682
        %v1693 = vsel %vm978, %v1692, %v1686
        %v1694 = vsel %vm980, %v1693, %v1690
        %v1695 = vpack.c.bf16 %v1694, %v1694
        %v1696 = vlaneseq
        %v1697 = vshrl.u32 %v1696, 7
        %v1698 = vsub.s32 6, %v1697
        %v1699 = vrot.slane %v448, %v1698
        %v1704 = vunpack.c.l.b16 %v444
        %v1705 = vunpack.c.l.b16 %v445
        %v1706 = vunpack.c.l.b16 %v446
        %v1707 = vunpack.c.l.b16 %v447
        %v1708 = vpack.c.b16 %v1705, %v1704
        %v1709 = vpack.c.b16 %v1707, %v1706
        %v1713 = vsel %vm463, %v1695, 0
        %1715 = vmatprep.subr.bf16.mxu0 0
        %1716 = vmatpush1.bf16.msra.mxu0 %v1708
        %1717 = vmatprep.subr.bf16.mxu0 0
        %1718 = vmatpush1.bf16.msra.mxu0 %v1709
        %1719 = vmatprep.subr.bf16.mxu0 0
        %1720 = vmatpush1.bf16.msra.mxu0 0
        %1721 = vmatprep.subr.bf16.mxu0 0
        %1722 = vmatpush1.bf16.msra.mxu0 0
        %1723 = vmatprep.subr.bf16.mxu0 0
        %1724 = vmatpush1.bf16.msra.mxu0 0
        %1725 = vmatprep.subr.bf16.mxu0 0
        %1726 = vmatpush1.bf16.msra.mxu0 0
        %1727 = vmatprep.subr.bf16.mxu0 0
        %1728 = vmatpush1.bf16.msra.mxu0 0
        %1729 = vmatprep.subr.bf16.mxu0 0
        %1730 = vmatpush1.bf16.msra.mxu0 0
        %1731 = vmatprep.subr.bf16.mxu0 0
        %1732 = vmatpush1.bf16.msra.mxu0 0
        %1733 = vmatprep.subr.bf16.mxu0 0
        %1734 = vmatpush1.bf16.msra.mxu0 0
        %1735 = vmatprep.subr.bf16.mxu0 0
        %1736 = vmatpush1.bf16.msra.mxu0 0
        %1737 = vmatprep.subr.bf16.mxu0 0
        %1738 = vmatpush1.bf16.msra.mxu0 0
        %1739 = vmatprep.subr.bf16.mxu0 0
        %1740 = vmatpush1.bf16.msra.mxu0 0
        %1741 = vmatprep.subr.bf16.mxu0 0
        %1742 = vmatpush1.bf16.msra.mxu0 0
        %1743 = vmatprep.subr.bf16.mxu0 0
        %1744 = vmatpush1.bf16.msra.mxu0 0
        %1745 = vmatprep.subr.bf16.mxu0 0
        %1746 = vmatpush1.bf16.msra.mxu0 0
        %1747 = vmatprep.mubr.bf16.mxu0 0
        %1748 = vmatmul.mubr.bf16.gmra.mrb[0].mxu0 %v1713
        %v1749 = vpop.f32.mrb[0].mxu0
        %v1750 = vadd.f32 %v1699, %v1749
        %v1751 = vpop.f32.mrb[0].mxu0
        %v1752 = vpop.f32.mrb[0].mxu0
        %v1753 = vpop.f32.mrb[0].mxu0
        %1754 = vdwg.mxu0
        %1755 = vst.msk [vmem:[%s412] sm:$0xff] %vm463, %v1750
        %s1756 = sand.u32 %s199, 1
        %s1757 = scalar_lea.sflag [#allocation4], %s1756
        %s1758 = sand.u32 %s199, 1
        %s1759 = smul.addr %s1758, 8
        %s1760 = scalar_lea.vmem [#allocation13], %s1759
        // Predicated region
        $region73: #{tpu_custom_call.1} parent=47 // pred_check
          %p1761 = pneg %p209
        $region74: #{tpu_custom_call.1} parent=47 // pred_check_branch
          %1763 = sbr.rel (%p1761) target = $region76
        $region75: #{tpu_custom_call.1} parent=47 // pred_region
          %s1765 = ssub.s32 128, 128
          %1766 = vsyncadd %s1757, %s1765
          %s1767 = smul.addr %s29, 128
          %s1768 = scalar_lea.hbm %s7, %s1767
          %s1770 = sshll.u32 %s1760, 4
          %s1771 = int_to_ptr.vmem [resolvable:$true] %s1770
          %1773 = dma.vmem_to_hbm [thread:$0]  %s1771, 128, %s1768, %s1757
        $region76: #{tpu_custom_call.1} parent=47 // pred_fallthru
          _
      $region48: #{tpu_custom_call.1} parent=5 // pred_fallthru
        _
      %p1774 = scmp.le.s32.totalorder 2, %s24
      // Predicated region
      $region77: #{tpu_custom_call.1} parent=5 // pred_check
        %p1775 = pneg %p1774
      $region78: #{tpu_custom_call.1} parent=5 // pred_check_branch
        %1777 = sbr.rel (%p1775) target = $region80
      $region79: #{tpu_custom_call.1} parent=5 // pred_region
        %s1778 = ssub.s32 %s24, 2
        // Predicated region
        $region81: #{tpu_custom_call.1} parent=79 // pred_check
          %p1779 = pneg %p215
        $region82: #{tpu_custom_call.1} parent=79 // pred_check_branch
          %1781 = sbr.rel (%p1779) target = $region84
        $region83: #{tpu_custom_call.1} parent=79 // pred_region
          %s1782 = sand.u32 %s200, 1
          %s1783 = scalar_lea.sflag [#allocation4], %s1782
          %s1784 = sand.u32 %s200, 1
          %s1785 = smul.addr %s1784, 8
          %s1786 = scalar_lea.vmem [#allocation13], %s1785
          %1787 = dma.done %s1783, 128
        $region84: #{tpu_custom_call.1} parent=79 // pred_fallthru
          _
      $region80: #{tpu_custom_call.1} parent=5 // pred_fallthru
        _
    $region6: #{tpu_custom_call.1} parent=1 // loop_footer
      %s28 = sadd.s32 1, %s24
    $region7: #{tpu_custom_call.1} parent=1 // loop_footer_branch
      %23 = sbr.rel target = $region3
    $region8: #{tpu_custom_call.1} parent=1 // loop_exit
      _
    %1788 = vsyncpa [#allocation3], 1
    %s1789 = scalar_lea.sflag [#allocation3], 1
    %1790 = vsyncpa %s1789, 1
    %1791 = vsyncpa [#allocation6], 1
    %s1792 = scalar_lea.sflag [#allocation6], 1
    %1793 = vsyncpa %s1792, 1
    %1794 = vsyncpa [#allocation9], 1
    %s1795 = scalar_lea.sflag [#allocation9], 1
    %1796 = vsyncpa %s1795, 1
    %1797 = vsyncpa [#allocation12], 1
    %1798 = vsyncpa [#allocation4], 1
    %s1799 = scalar_lea.sflag [#allocation4], 1
    %1800 = vsyncpa %s1799, 1

</llo_original>
